<compile_context>
chip_gen: v7x
topology: tpu7x:2x2x1
jax: 0.10.0
libtpu: 0.0.40
codegen_flags: <defaults>
</compile_context>

<pallas_src>
import math
import functools

import jax
import jax.numpy as jnp
from jax.experimental import pallas as pl
from jax.experimental.pallas import tpu as pltpu

# ---------------- config (small, consistent with the module) ----------------
BATCH = 2
SEQ_Q = 8        # query sequence length (input_tensor)
SEQ_K = 8        # key/value sequence length (ctx_tensor)
HIDDEN = 32
NUM_HEADS = 4
HEAD_DIM = HIDDEN // NUM_HEADS
LN_EPS = 1e-12


# ------------------------------- Pallas kernel -------------------------------
def _crossatt_kernel(x_ref, ctx_ref, amask_ref, tmask_ref,
                     wq_ref, wkv_ref, wo_ref, vecs_ref,
                     out_ref, probs_ref, *, num_heads):
    nh = num_heads
    x = x_ref[...]                      # (B, Sq, H)
    c = ctx_ref[...]                    # (B, Sk, H)
    B, Sq, H = x.shape
    Sk = c.shape[1]
    d = H // nh
    G = B * nh

    vecs = vecs_ref[...]                # (6, H): bq(scaled), bk, bv, bo, gamma, beta
    bq, bk, bv = vecs[0], vecs[1], vecs[2]
    bo, gamma, beta = vecs[3], vecs[4], vecs[5]

    # ---- fused, lane-dense 2-D projections on the MXU -----------------------
    x2 = x.reshape(B * Sq, H)
    c2 = c.reshape(B * Sk, H)
    q2 = jnp.dot(x2, wq_ref[...], preferred_element_type=jnp.float32) + bq   # (B*Sq, H)
    kv2 = jnp.dot(c2, wkv_ref[...], preferred_element_type=jnp.float32)      # (B*Sk, 2H)
    k2 = kv2[:, :H] + bk                                                     # (B*Sk, H)
    v2 = kv2[:, H:] + bv                                                     # (B*Sk, H)

    # ---- split heads only where the score contraction needs it --------------
    def split_heads(z2, S):             # (B*S, H) -> (B*nh, S, d), g = b*nh + h
        z3 = z2.reshape(B, S, H)
        parts = [z3[:, :, h * d:(h + 1) * d] for h in range(nh)]
        return jnp.stack(parts, axis=1).reshape(G, S, d)

    q_g = split_heads(q2, Sq)
    k_g = split_heads(k2, Sk)
    v_g = split_heads(v2, Sk)

    # attention scores for all (batch, head) pairs: single-batch-dim einsum
    s = jnp.einsum('gqd,gkd->gqk', q_g, k_g,
                   preferred_element_type=jnp.float32)                        # (G, Sq, Sk)
    s4 = s.reshape(B, nh, Sq, Sk) + amask_ref[...][:, None]                   # +(B,1,1,Sk)

    # numerically stable softmax over the key axis (reciprocal of the denom)
    s4 = s4 - jnp.max(s4, axis=-1, keepdims=True)
    e = jnp.exp(s4)
    p4 = e * (1.0 / jnp.sum(e, axis=-1, keepdims=True))

    # tmp_att_mask.unsqueeze(1).unsqueeze(3): multiplicative per-query mask
    tm = tmask_ref[...]                                                       # (B, Sq, 1)
    p4 = p4 * tm[:, None]                                                     # (B,1,Sq,1)
    probs_ref[...] = p4.astype(probs_ref.dtype)

    # per-head context, then merge heads back to a lane-dense (B*Sq, H) slab
    ctx_g = jnp.einsum('gqk,gkd->gqd', p4.reshape(G, Sq, Sk), v_g,
                       preferred_element_type=jnp.float32)                    # (G, Sq, d)
    ctx4 = ctx_g.reshape(B, nh, Sq, d)
    ctx3 = jnp.concatenate([ctx4[:, h] for h in range(nh)], axis=-1)          # (B, Sq, H)

    # output dense: one full-width (H,H) matmul (head-sum folded into it)
    hs2 = jnp.dot(ctx3.reshape(B * Sq, H), wo_ref[...],
                  preferred_element_type=jnp.float32) + bo                    # (B*Sq, H)
    hs = hs2.reshape(B, Sq, H)

    # BertAttOutput: dense -> (dropout=id) -> LayerNorm(residual) -> erf-GELU
    res = hs + x
    mean = jnp.mean(res, axis=-1, keepdims=True)
    var = jnp.mean((res - mean) ** 2, axis=-1, keepdims=True)
    ln = (res - mean) * jax.lax.rsqrt(var + LN_EPS) * gamma + beta
    act = ln * 0.5 * (1.0 + jax.lax.erf(ln * (1.0 / math.sqrt(2.0))))

    # final torch.multiply(attention_output, tmp_mask.unsqueeze(2))
    out_ref[...] = (act * tm).astype(out_ref.dtype)


# -------------------- one-time parameter packing (hoisted) --------------------
def pack_params(params):
    """Called ONCE at parameter-load time (not in the per-call path)."""
    scale = 1.0 / math.sqrt(HEAD_DIM)
    wq = params["wq"] * scale                                   # fold 1/sqrt(d) into Q
    wkv = jnp.concatenate([params["wk"], params["wv"]], axis=1)  # (H, 2H)
    wo = params["wo"]                                            # (H, H) unchanged
    vecs = jnp.stack([params["bq"] * scale, params["bk"], params["bv"],
                      params["bo"], params["gamma"], params["beta"]], axis=0)  # (6, H)
    return {"wq": wq, "wkv": wkv, "wo": wo, "vecs": vecs}


# --------------------------------- wrapper -----------------------------------
def bert_crossatt_layer(x, ctx, ctx_att_mask, tmp_mask, packed):
    B, Sq, H = x.shape
    _, Sk, _ = ctx.shape
    nh = NUM_HEADS

    amask = ctx_att_mask.reshape(B, 1, Sk).astype(jnp.float32)   # additive mask
    tmask = tmp_mask.reshape(B, Sq, 1).astype(jnp.float32)       # multiplicative mask

    kernel = functools.partial(_crossatt_kernel, num_heads=nh)

    n_inputs = 8
    in_specs = [pl.BlockSpec(memory_space=pltpu.MemorySpace.VMEM)
                for _ in range(n_inputs)]
    out_specs = (pl.BlockSpec(memory_space=pltpu.MemorySpace.VMEM),
                 pl.BlockSpec(memory_space=pltpu.MemorySpace.VMEM))
    out_shapes = (jax.ShapeDtypeStruct((B, Sq, H), jnp.float32),
                  jax.ShapeDtypeStruct((B, nh, Sq, Sk), jnp.float32))

    # Single kernel invocation: no grid, whole problem resident in VMEM (<1 MiB).
    # TODO(synk): if B/Sq/Sk/H ever scale up (v7x: 64 MiB VMEM), add a grid over
    # B with weights on a constant index_map and set vmem_limit_bytes.
    return pl.pallas_call(
        kernel,
        out_shape=out_shapes,
        in_specs=in_specs,
        out_specs=out_specs,
    )(x, ctx, amask, tmask,
      packed["wq"], packed["wkv"], packed["wo"], packed["vecs"])


# ---------------------------- pure-JAX reference ------------------------------
def reference(x, ctx, amask, tmask, p):
    B, Sq, H = x.shape
    Sk = ctx.shape[1]
    nh, d = NUM_HEADS, HEAD_DIM
    q = (x @ p["wq"] + p["bq"]).reshape(B, Sq, nh, d).transpose(0, 2, 1, 3)
    k = (ctx @ p["wk"] + p["bk"]).reshape(B, Sk, nh, d).transpose(0, 2, 1, 3)
    v = (ctx @ p["wv"] + p["bv"]).reshape(B, Sk, nh, d).transpose(0, 2, 1, 3)
    scores = jnp.einsum("bhqd,bhkd->bhqk", q, k) / math.sqrt(d) + amask
    probs = jax.nn.softmax(scores, axis=-1)
    probs = probs * tmask[:, None, :, None]
    ctxl = jnp.einsum("bhqk,bhkd->bhqd", probs, v).transpose(0, 2, 1, 3).reshape(B, Sq, H)
    hs = ctxl @ p["wo"] + p["bo"]
    res = hs + x
    mean = res.mean(-1, keepdims=True)
    var = ((res - mean) ** 2).mean(-1, keepdims=True)
    ln = (res - mean) / jnp.sqrt(var + LN_EPS) * p["gamma"] + p["beta"]
    act = ln * 0.5 * (1.0 + jax.lax.erf(ln / math.sqrt(2.0)))
    return act * tmask[:, :, None], probs


# ----------------------------------- main -------------------------------------
if __name__ == "__main__":
    key = jax.random.PRNGKey(0)
    keys = jax.random.split(key, 12)

    H = HIDDEN
    params = {
        "wq": jax.random.normal(keys[0], (H, H), jnp.float32) * 0.05,
        "bq": jax.random.normal(keys[1], (H,), jnp.float32) * 0.01,
        "wk": jax.random.normal(keys[2], (H, H), jnp.float32) * 0.05,
        "bk": jax.random.normal(keys[3], (H,), jnp.float32) * 0.01,
        "wv": jax.random.normal(keys[4], (H, H), jnp.float32) * 0.05,
        "bv": jax.random.normal(keys[5], (H,), jnp.float32) * 0.01,
        "wo": jax.random.normal(keys[6], (H, H), jnp.float32) * 0.05,
        "bo": jax.random.normal(keys[7], (H,), jnp.float32) * 0.01,
        "gamma": jnp.ones((H,), jnp.float32),
        "beta": jnp.zeros((H,), jnp.float32),
    }
    packed = jax.tree_util.tree_map(jax.block_until_ready, pack_params(params))

    x = jax.random.normal(keys[8], (BATCH, SEQ_Q, HIDDEN), jnp.float32)
    ctx = jax.random.normal(keys[9], (BATCH, SEQ_K, HIDDEN), jnp.float32)

    # additive ctx attention mask: 0 where attended, -1e4 where masked
    amask = jnp.zeros((BATCH, 1, 1, SEQ_K), jnp.float32)
    amask = amask.at[1, 0, 0, SEQ_K - 2:].set(-1e4)

    # tmp_mask over query positions (multiplicative)
    tmp_mask = jnp.ones((BATCH, SEQ_Q), jnp.float32)
    tmp_mask = tmp_mask.at[0, SEQ_Q - 1].set(0.0)

    out, probs = bert_crossatt_layer(x, ctx, amask, tmp_mask, packed)
    out = jax.block_until_ready(out)
    probs = jax.block_until_ready(probs)

    ref_out, ref_probs = reference(x, ctx, amask, tmp_mask, params)
    assert jnp.allclose(out, ref_out, rtol=1e-4, atol=1e-4)
    assert jnp.allclose(probs, ref_probs, rtol=1e-4, atol=1e-4)

    print("KERNEL_OK")
</pallas_src>

<mosaic_0001>
module attributes {stable_mosaic.version = 11 : i64} {
  func.func @_crossatt_kernel(%arg0: memref<2x8x32xf32, #tpu.memory_space<vmem>>, %arg1: memref<2x8x32xf32, #tpu.memory_space<vmem>>, %arg2: memref<2x1x8xf32, #tpu.memory_space<vmem>>, %arg3: memref<2x8x1xf32, #tpu.memory_space<vmem>>, %arg4: memref<32x32xf32, #tpu.memory_space<vmem>>, %arg5: memref<32x64xf32, #tpu.memory_space<vmem>>, %arg6: memref<32x32xf32, #tpu.memory_space<vmem>>, %arg7: memref<6x32xf32, #tpu.memory_space<vmem>>, %arg8: memref<2x8x32xf32, #tpu.memory_space<vmem>>, %arg9: memref<2x4x8x8xf32, #tpu.memory_space<vmem>>) attributes {dimension_semantics = [], scalar_prefetch = 0 : i64, scratch_operands = 0 : i64, tpu.core_type = #tpu.core_type<tc>} {
    %c0 = arith.constant 0 : index
    %c0_0 = arith.constant 0 : index
    %c0_1 = arith.constant 0 : index
    %0 = vector.load %arg0[%c0, %c0_0, %c0_1] : memref<2x8x32xf32, #tpu.memory_space<vmem>>, vector<2x8x32xf32>
    %c0_2 = arith.constant 0 : index
    %c0_3 = arith.constant 0 : index
    %c0_4 = arith.constant 0 : index
    %1 = vector.load %arg1[%c0_2, %c0_3, %c0_4] : memref<2x8x32xf32, #tpu.memory_space<vmem>>, vector<2x8x32xf32>
    %c0_5 = arith.constant 0 : index
    %c0_6 = arith.constant 0 : index
    %2 = vector.load %arg7[%c0_5, %c0_6] : memref<6x32xf32, #tpu.memory_space<vmem>>, vector<6x32xf32>
    %3 = vector.extract_strided_slice %2 {offsets = [0, 0], sizes = [1, 32], strides = [1, 1]} : vector<6x32xf32> to vector<1x32xf32>
    %4 = vector.shape_cast %3 : vector<1x32xf32> to vector<32xf32>
    %5 = vector.extract_strided_slice %2 {offsets = [1, 0], sizes = [1, 32], strides = [1, 1]} : vector<6x32xf32> to vector<1x32xf32>
    %6 = vector.shape_cast %5 : vector<1x32xf32> to vector<32xf32>
    %7 = vector.extract_strided_slice %2 {offsets = [2, 0], sizes = [1, 32], strides = [1, 1]} : vector<6x32xf32> to vector<1x32xf32>
    %8 = vector.shape_cast %7 : vector<1x32xf32> to vector<32xf32>
    %9 = vector.extract_strided_slice %2 {offsets = [3, 0], sizes = [1, 32], strides = [1, 1]} : vector<6x32xf32> to vector<1x32xf32>
    %10 = vector.shape_cast %9 : vector<1x32xf32> to vector<32xf32>
    %11 = vector.extract_strided_slice %2 {offsets = [4, 0], sizes = [1, 32], strides = [1, 1]} : vector<6x32xf32> to vector<1x32xf32>
    %12 = vector.shape_cast %11 : vector<1x32xf32> to vector<32xf32>
    %13 = vector.extract_strided_slice %2 {offsets = [5, 0], sizes = [1, 32], strides = [1, 1]} : vector<6x32xf32> to vector<1x32xf32>
    %14 = vector.shape_cast %13 : vector<1x32xf32> to vector<32xf32>
    %15 = vector.shape_cast %0 : vector<2x8x32xf32> to vector<16x32xf32>
    %16 = vector.shape_cast %1 : vector<2x8x32xf32> to vector<16x32xf32>
    %c0_7 = arith.constant 0 : index
    %c0_8 = arith.constant 0 : index
    %17 = vector.load %arg4[%c0_7, %c0_8] : memref<32x32xf32, #tpu.memory_space<vmem>>, vector<32x32xf32>
    %cst = arith.constant dense<0.000000e+00> : vector<16x32xf32>
    %18 = tpu.matmul %15, %17, %cst {dimension_numbers = #tpu.dot_dimension_numbers<[1], [0], [0], [1], [0, 0, 1, 1], [], []>} : vector<16x32xf32>, vector<32x32xf32>, vector<16x32xf32> -> vector<16x32xf32>
    %19 = vector.shape_cast %4 : vector<32xf32> to vector<1x32xf32>
    %20 = vector.broadcast %19 : vector<1x32xf32> to vector<16x32xf32>
    %21 = arith.addf %18, %20 : vector<16x32xf32>
    %c0_9 = arith.constant 0 : index
    %c0_10 = arith.constant 0 : index
    %22 = vector.load %arg5[%c0_9, %c0_10] : memref<32x64xf32, #tpu.memory_space<vmem>>, vector<32x64xf32>
    %cst_11 = arith.constant dense<0.000000e+00> : vector<16x64xf32>
    %23 = tpu.matmul %16, %22, %cst_11 {dimension_numbers = #tpu.dot_dimension_numbers<[1], [0], [0], [1], [0, 0, 1, 1], [], []>} : vector<16x32xf32>, vector<32x64xf32>, vector<16x64xf32> -> vector<16x64xf32>
    %24 = vector.extract_strided_slice %23 {offsets = [0, 0], sizes = [16, 32], strides = [1, 1]} : vector<16x64xf32> to vector<16x32xf32>
    %25 = vector.shape_cast %6 : vector<32xf32> to vector<1x32xf32>
    %26 = vector.broadcast %25 : vector<1x32xf32> to vector<16x32xf32>
    %27 = arith.addf %24, %26 : vector<16x32xf32>
    %28 = vector.extract_strided_slice %23 {offsets = [0, 32], sizes = [16, 32], strides = [1, 1]} : vector<16x64xf32> to vector<16x32xf32>
    %29 = vector.shape_cast %8 : vector<32xf32> to vector<1x32xf32>
    %30 = vector.broadcast %29 : vector<1x32xf32> to vector<16x32xf32>
    %31 = arith.addf %28, %30 : vector<16x32xf32>
    %32 = vector.shape_cast %21 : vector<16x32xf32> to vector<2x8x32xf32>
    %33 = vector.extract_strided_slice %32 {offsets = [0, 0, 0], sizes = [2, 8, 8], strides = [1, 1, 1]} : vector<2x8x32xf32> to vector<2x8x8xf32>
    %34 = vector.extract_strided_slice %32 {offsets = [0, 0, 8], sizes = [2, 8, 8], strides = [1, 1, 1]} : vector<2x8x32xf32> to vector<2x8x8xf32>
    %35 = vector.extract_strided_slice %32 {offsets = [0, 0, 16], sizes = [2, 8, 8], strides = [1, 1, 1]} : vector<2x8x32xf32> to vector<2x8x8xf32>
    %36 = vector.extract_strided_slice %32 {offsets = [0, 0, 24], sizes = [2, 8, 8], strides = [1, 1, 1]} : vector<2x8x32xf32> to vector<2x8x8xf32>
    %37 = vector.shape_cast %33 : vector<2x8x8xf32> to vector<2x1x8x8xf32>
    %38 = vector.shape_cast %34 : vector<2x8x8xf32> to vector<2x1x8x8xf32>
    %39 = vector.shape_cast %35 : vector<2x8x8xf32> to vector<2x1x8x8xf32>
    %40 = vector.shape_cast %36 : vector<2x8x8xf32> to vector<2x1x8x8xf32>
    %41 = tpu.concatenate %37, %38, %39, %40 in 1 : vector<2x1x8x8xf32>, vector<2x1x8x8xf32>, vector<2x1x8x8xf32>, vector<2x1x8x8xf32> -> vector<2x4x8x8xf32>
    %42 = vector.shape_cast %41 : vector<2x4x8x8xf32> to vector<8x8x8xf32>
    %43 = vector.shape_cast %27 : vector<16x32xf32> to vector<2x8x32xf32>
    %44 = vector.extract_strided_slice %43 {offsets = [0, 0, 0], sizes = [2, 8, 8], strides = [1, 1, 1]} : vector<2x8x32xf32> to vector<2x8x8xf32>
    %45 = vector.extract_strided_slice %43 {offsets = [0, 0, 8], sizes = [2, 8, 8], strides = [1, 1, 1]} : vector<2x8x32xf32> to vector<2x8x8xf32>
    %46 = vector.extract_strided_slice %43 {offsets = [0, 0, 16], sizes = [2, 8, 8], strides = [1, 1, 1]} : vector<2x8x32xf32> to vector<2x8x8xf32>
    %47 = vector.extract_strided_slice %43 {offsets = [0, 0, 24], sizes = [2, 8, 8], strides = [1, 1, 1]} : vector<2x8x32xf32> to vector<2x8x8xf32>
    %48 = vector.shape_cast %44 : vector<2x8x8xf32> to vector<2x1x8x8xf32>
    %49 = vector.shape_cast %45 : vector<2x8x8xf32> to vector<2x1x8x8xf32>
    %50 = vector.shape_cast %46 : vector<2x8x8xf32> to vector<2x1x8x8xf32>
    %51 = vector.shape_cast %47 : vector<2x8x8xf32> to vector<2x1x8x8xf32>
    %52 = tpu.concatenate %48, %49, %50, %51 in 1 : vector<2x1x8x8xf32>, vector<2x1x8x8xf32>, vector<2x1x8x8xf32>, vector<2x1x8x8xf32> -> vector<2x4x8x8xf32>
    %53 = vector.shape_cast %52 : vector<2x4x8x8xf32> to vector<8x8x8xf32>
    %54 = vector.shape_cast %31 : vector<16x32xf32> to vector<2x8x32xf32>
    %55 = vector.extract_strided_slice %54 {offsets = [0, 0, 0], sizes = [2, 8, 8], strides = [1, 1, 1]} : vector<2x8x32xf32> to vector<2x8x8xf32>
    %56 = vector.extract_strided_slice %54 {offsets = [0, 0, 8], sizes = [2, 8, 8], strides = [1, 1, 1]} : vector<2x8x32xf32> to vector<2x8x8xf32>
    %57 = vector.extract_strided_slice %54 {offsets = [0, 0, 16], sizes = [2, 8, 8], strides = [1, 1, 1]} : vector<2x8x32xf32> to vector<2x8x8xf32>
    %58 = vector.extract_strided_slice %54 {offsets = [0, 0, 24], sizes = [2, 8, 8], strides = [1, 1, 1]} : vector<2x8x32xf32> to vector<2x8x8xf32>
    %59 = vector.shape_cast %55 : vector<2x8x8xf32> to vector<2x1x8x8xf32>
    %60 = vector.shape_cast %56 : vector<2x8x8xf32> to vector<2x1x8x8xf32>
    %61 = vector.shape_cast %57 : vector<2x8x8xf32> to vector<2x1x8x8xf32>
    %62 = vector.shape_cast %58 : vector<2x8x8xf32> to vector<2x1x8x8xf32>
    %63 = tpu.concatenate %59, %60, %61, %62 in 1 : vector<2x1x8x8xf32>, vector<2x1x8x8xf32>, vector<2x1x8x8xf32>, vector<2x1x8x8xf32> -> vector<2x4x8x8xf32>
    %64 = vector.shape_cast %63 : vector<2x4x8x8xf32> to vector<8x8x8xf32>
    "tpu.trace_start"() <{level = 10 : i32, message = "gqd,gkd->gqk"}> : () -> ()
    %cst_12 = arith.constant dense<0.000000e+00> : vector<8x8x8xf32>
    %65 = tpu.matmul %42, %53, %cst_12 {dimension_numbers = #tpu.dot_dimension_numbers<[2], [2], [1], [1], [0, 0, 0, 1, 1, 1], [0], [0]>} : vector<8x8x8xf32>, vector<8x8x8xf32>, vector<8x8x8xf32> -> vector<8x8x8xf32>
    "tpu.trace_stop"() : () -> ()
    %66 = vector.shape_cast %65 : vector<8x8x8xf32> to vector<2x4x8x8xf32>
    %c0_13 = arith.constant 0 : index
    %c0_14 = arith.constant 0 : index
    %c0_15 = arith.constant 0 : index
    %67 = vector.load %arg2[%c0_13, %c0_14, %c0_15] : memref<2x1x8xf32, #tpu.memory_space<vmem>>, vector<2x1x8xf32>
    %68 = vector.shape_cast %67 : vector<2x1x8xf32> to vector<2x1x1x8xf32>
    %69 = vector.broadcast %68 : vector<2x1x1x8xf32> to vector<2x4x8x8xf32>
    %70 = arith.addf %66, %69 : vector<2x4x8x8xf32>
    %cst_16 = arith.constant dense<0xFF800000> : vector<2x4x8xf32>
    %71 = vector.multi_reduction <maximumf>, %70, %cst_16 [3] : vector<2x4x8x8xf32> to vector<2x4x8xf32>
    %72 = vector.shape_cast %71 : vector<2x4x8xf32> to vector<2x4x8x1xf32>
    %73 = vector.broadcast %72 : vector<2x4x8x1xf32> to vector<2x4x8x8xf32>
    %74 = arith.subf %70, %73 : vector<2x4x8x8xf32>
    %75 = math.exp %74 : vector<2x4x8x8xf32>
    %cst_17 = arith.constant dense<0.000000e+00> : vector<2x4x8xf32>
    %76 = vector.multi_reduction <add>, %75, %cst_17 [3] : vector<2x4x8x8xf32> to vector<2x4x8xf32>
    %77 = vector.shape_cast %76 : vector<2x4x8xf32> to vector<2x4x8x1xf32>
    %cst_18 = arith.constant 1.000000e+00 : f32
    %78 = vector.broadcast %cst_18 : f32 to vector<2x4x8x1xf32>
    %79 = arith.divf %78, %77 : vector<2x4x8x1xf32>
    %80 = vector.broadcast %79 : vector<2x4x8x1xf32> to vector<2x4x8x8xf32>
    %81 = arith.mulf %75, %80 : vector<2x4x8x8xf32>
    %c0_19 = arith.constant 0 : index
    %c0_20 = arith.constant 0 : index
    %c0_21 = arith.constant 0 : index
    %82 = vector.load %arg3[%c0_19, %c0_20, %c0_21] : memref<2x8x1xf32, #tpu.memory_space<vmem>>, vector<2x8x1xf32>
    %83 = vector.shape_cast %82 : vector<2x8x1xf32> to vector<2x1x8x1xf32>
    %84 = vector.broadcast %83 : vector<2x1x8x1xf32> to vector<2x4x8x8xf32>
    %85 = arith.mulf %81, %84 : vector<2x4x8x8xf32>
    %c0_22 = arith.constant 0 : index
    %c0_23 = arith.constant 0 : index
    %c0_24 = arith.constant 0 : index
    %c0_25 = arith.constant 0 : index
    %86 = vector.load %arg9[%c0_22, %c0_23, %c0_24, %c0_25] : memref<2x4x8x8xf32, #tpu.memory_space<vmem>>, vector<2x4x8x8xf32>
    tpu.vector_store %arg9[%c0_22, %c0_23, %c0_24, %c0_25], %85 {strides = array<i32>} : memref<2x4x8x8xf32, #tpu.memory_space<vmem>>, vector<2x4x8x8xf32>,
    %87 = vector.shape_cast %85 : vector<2x4x8x8xf32> to vector<8x8x8xf32>
    "tpu.trace_start"() <{level = 10 : i32, message = "gqk,gkd->gqd"}> : () -> ()
    %cst_26 = arith.constant dense<0.000000e+00> : vector<8x8x8xf32>
    %88 = tpu.matmul %87, %64, %cst_26 {dimension_numbers = #tpu.dot_dimension_numbers<[2], [1], [1], [2], [0, 0, 0, 1, 1, 2], [0], [0]>} : vector<8x8x8xf32>, vector<8x8x8xf32>, vector<8x8x8xf32> -> vector<8x8x8xf32>
    "tpu.trace_stop"() : () -> ()
    %89 = vector.shape_cast %88 : vector<8x8x8xf32> to vector<2x4x8x8xf32>
    %90 = vector.extract_strided_slice %89 {offsets = [0, 0, 0, 0], sizes = [2, 1, 8, 8], strides = [1, 1, 1, 1]} : vector<2x4x8x8xf32> to vector<2x1x8x8xf32>
    %91 = vector.shape_cast %90 : vector<2x1x8x8xf32> to vector<2x8x8xf32>
    %92 = vector.extract_strided_slice %89 {offsets = [0, 1, 0, 0], sizes = [2, 1, 8, 8], strides = [1, 1, 1, 1]} : vector<2x4x8x8xf32> to vector<2x1x8x8xf32>
    %93 = vector.shape_cast %92 : vector<2x1x8x8xf32> to vector<2x8x8xf32>
    %94 = vector.extract_strided_slice %89 {offsets = [0, 2, 0, 0], sizes = [2, 1, 8, 8], strides = [1, 1, 1, 1]} : vector<2x4x8x8xf32> to vector<2x1x8x8xf32>
    %95 = vector.shape_cast %94 : vector<2x1x8x8xf32> to vector<2x8x8xf32>
    %96 = vector.extract_strided_slice %89 {offsets = [0, 3, 0, 0], sizes = [2, 1, 8, 8], strides = [1, 1, 1, 1]} : vector<2x4x8x8xf32> to vector<2x1x8x8xf32>
    %97 = vector.shape_cast %96 : vector<2x1x8x8xf32> to vector<2x8x8xf32>
    %98 = tpu.concatenate %91, %93, %95, %97 in 2 : vector<2x8x8xf32>, vector<2x8x8xf32>, vector<2x8x8xf32>, vector<2x8x8xf32> -> vector<2x8x32xf32>
    %99 = vector.shape_cast %98 : vector<2x8x32xf32> to vector<16x32xf32>
    %c0_27 = arith.constant 0 : index
    %c0_28 = arith.constant 0 : index
    %100 = vector.load %arg6[%c0_27, %c0_28] : memref<32x32xf32, #tpu.memory_space<vmem>>, vector<32x32xf32>
    %cst_29 = arith.constant dense<0.000000e+00> : vector<16x32xf32>
    %101 = tpu.matmul %99, %100, %cst_29 {dimension_numbers = #tpu.dot_dimension_numbers<[1], [0], [0], [1], [0, 0, 1, 1], [], []>} : vector<16x32xf32>, vector<32x32xf32>, vector<16x32xf32> -> vector<16x32xf32>
    %102 = vector.shape_cast %10 : vector<32xf32> to vector<1x32xf32>
    %103 = vector.broadcast %102 : vector<1x32xf32> to vector<16x32xf32>
    %104 = arith.addf %101, %103 : vector<16x32xf32>
    %105 = vector.shape_cast %104 : vector<16x32xf32> to vector<2x8x32xf32>
    %106 = arith.addf %105, %0 : vector<2x8x32xf32>
    %cst_30 = arith.constant dense<0.000000e+00> : vector<2x8xf32>
    %107 = vector.multi_reduction <add>, %106, %cst_30 [2] : vector<2x8x32xf32> to vector<2x8xf32>
    %108 = vector.shape_cast %107 : vector<2x8xf32> to vector<2x8x1xf32>
    %cst_31 = arith.constant 3.200000e+01 : f32
    %109 = vector.broadcast %cst_31 : f32 to vector<2x8x1xf32>
    %110 = arith.divf %108, %109 : vector<2x8x1xf32>
    %111 = vector.broadcast %110 : vector<2x8x1xf32> to vector<2x8x32xf32>
    %112 = arith.subf %106, %111 : vector<2x8x32xf32>
    %113 = arith.mulf %112, %112 : vector<2x8x32xf32>
    %cst_32 = arith.constant dense<0.000000e+00> : vector<2x8xf32>
    %114 = vector.multi_reduction <add>, %113, %cst_32 [2] : vector<2x8x32xf32> to vector<2x8xf32>
    %115 = vector.shape_cast %114 : vector<2x8xf32> to vector<2x8x1xf32>
    %cst_33 = arith.constant 3.200000e+01 : f32
    %116 = vector.broadcast %cst_33 : f32 to vector<2x8x1xf32>
    %117 = arith.divf %115, %116 : vector<2x8x1xf32>
    %118 = vector.broadcast %110 : vector<2x8x1xf32> to vector<2x8x32xf32>
    %119 = arith.subf %106, %118 : vector<2x8x32xf32>
    %cst_34 = arith.constant 9.99999996E-13 : f32
    %120 = vector.broadcast %cst_34 : f32 to vector<2x8x1xf32>
    %121 = arith.addf %117, %120 : vector<2x8x1xf32>
    %122 = math.rsqrt %121 : vector<2x8x1xf32>
    %123 = vector.broadcast %122 : vector<2x8x1xf32> to vector<2x8x32xf32>
    %124 = arith.mulf %119, %123 : vector<2x8x32xf32>
    %125 = vector.shape_cast %12 : vector<32xf32> to vector<1x1x32xf32>
    %126 = vector.broadcast %125 : vector<1x1x32xf32> to vector<2x8x32xf32>
    %127 = arith.mulf %124, %126 : vector<2x8x32xf32>
    %128 = vector.shape_cast %14 : vector<32xf32> to vector<1x1x32xf32>
    %129 = vector.broadcast %128 : vector<1x1x32xf32> to vector<2x8x32xf32>
    %130 = arith.addf %127, %129 : vector<2x8x32xf32>
    %cst_35 = arith.constant 5.000000e-01 : f32
    %131 = vector.broadcast %cst_35 : f32 to vector<2x8x32xf32>
    %132 = arith.mulf %130, %131 : vector<2x8x32xf32>
    %cst_36 = arith.constant 0.707106769 : f32
    %133 = vector.broadcast %cst_36 : f32 to vector<2x8x32xf32>
    %134 = arith.mulf %130, %133 : vector<2x8x32xf32>
    %135 = math.erf %134 : vector<2x8x32xf32>
    %cst_37 = arith.constant 1.000000e+00 : f32
    %136 = vector.broadcast %cst_37 : f32 to vector<2x8x32xf32>
    %137 = arith.addf %136, %135 : vector<2x8x32xf32>
    %138 = arith.mulf %132, %137 : vector<2x8x32xf32>
    %139 = vector.broadcast %82 : vector<2x8x1xf32> to vector<2x8x32xf32>
    %140 = arith.mulf %138, %139 : vector<2x8x32xf32>
    %c0_38 = arith.constant 0 : index
    %c0_39 = arith.constant 0 : index
    %c0_40 = arith.constant 0 : index
    %141 = vector.load %arg8[%c0_38, %c0_39, %c0_40] : memref<2x8x32xf32, #tpu.memory_space<vmem>>, vector<2x8x32xf32>
    tpu.vector_store %arg8[%c0_38, %c0_39, %c0_40], %140 {strides = array<i32>} : memref<2x8x32xf32, #tpu.memory_space<vmem>>, vector<2x8x32xf32>,
    return
  }
}

</mosaic_0001>

<llo_original>
// kernel: tpu_custom_call.1
$region0: #{tpu_custom_call.1}
  #allocation0 [shape = 'u32[]', space=smem, size = 0x4, offset = 0x4, fixed_abs, tag = 'smem constant byte address 0x4 - core index']
  #allocation1 [shape = 'u32[144,128]{1,0:T(1,128)}', space=vmem, size = 0x12000, scoped, tag = 'internal scratch']
  %s0 = inlined_call_operand.hbm [shape: f32[2,8,32], index: 0, kind: input, shape index: {}]
  %s1 = inlined_call_operand.hbm [shape: f32[2,8,32], index: 1, kind: input, shape index: {}]
  %s2 = inlined_call_operand.hbm [shape: f32[2,1,8], index: 2, kind: input, shape index: {}]
  %s3 = inlined_call_operand.vmem [shape: f32[2,8,1], index: 3, kind: input, shape index: {}]
  %s4 = inlined_call_operand.vmem [shape: f32[32,32], index: 4, kind: input, shape index: {}]
  %s5 = inlined_call_operand.hbm [shape: f32[32,64], index: 5, kind: input, shape index: {}]
  %s6 = inlined_call_operand.hbm [shape: f32[32,32], index: 6, kind: input, shape index: {}]
  %s7 = inlined_call_operand.vmem [shape: f32[6,32], index: 7, kind: input, shape index: {}]
  %s8 = inlined_call_operand.hbm [shape: f32[2,8,32], index: 8, kind: output, shape index: {0}]
  %s9 = inlined_call_operand.hbm [shape: f32[2,4,8,8], index: 9, kind: output, shape index: {1}]
  %10 = xla_tuple %s8, %s9
  %s11 = sld [smem:[#allocation0]]
  $region70: #{tpu_custom_call.1} parent=0
    _
  %s13 = ssub.s32 1, %s11
  %s14 = scalar_select 0, %s13, %s11
  $region1: #{tpu_custom_call.1} parent=0
    #allocation2 [shape = 'u8[8192]{0}', space=vmem, size = 0x2000, scoped, tag = 'input window, operand 0, single buffered']
    #allocation3 [shape = 's32[1]{0}', space=sflag, size = 0x4, scoped, tag = 'scoped memory for tpu_custom_call.1']
    #allocation4 [shape = 's32[1]{0}', space=sflag, size = 0x4, scoped, tag = 'scoped memory for tpu_custom_call.1']
    #allocation5 [shape = 'u8[8192]{0}', space=vmem, size = 0x2000, scoped, tag = 'input window, operand 1, single buffered']
    #allocation6 [shape = 's32[1]{0}', space=sflag, size = 0x4, scoped, tag = 'scoped memory for tpu_custom_call.1']
    #allocation7 [shape = 'u8[1024]{0}', space=vmem, size = 0x400, scoped, tag = 'input window, operand 2, single buffered']
    #allocation8 [shape = 'u8[16384]{0}', space=vmem, size = 0x4000, scoped, tag = 'input window, operand 5, single buffered']
    #allocation9 [shape = 's32[1]{0}', space=sflag, size = 0x4, scoped, tag = 'scoped memory for tpu_custom_call.1']
    #allocation10 [shape = 'u8[16384]{0}', space=vmem, size = 0x4000, scoped, tag = 'input window, operand 6, single buffered']
    #allocation11 [shape = 'u8[8192]{0}', space=vmem, size = 0x2000, scoped, tag = 'output window, operand 0, single buffered']
    #allocation12 [shape = 'u8[32768]{0}', space=vmem, size = 0x8000, scoped, tag = 'output window, operand 1, single buffered']
    #allocation13 [shape = 's32[1]{0}', space=sflag, size = 0x4, scoped, tag = 'scoped memory for tpu_custom_call.1']
    %15 = vsyncpa [#allocation3], 0
    %16 = vsyncpa [#allocation6], 0
    %17 = vsyncpa [#allocation9], 0
    %18 = vsyncpa [#allocation4], 0
    %19 = vsyncpa [#allocation13], 0
    // Predicated region
    $region2: #{tpu_custom_call.1} parent=1 // pred_check
      _
    $region3: #{tpu_custom_call.1} parent=1 // pred_check_branch
      %21 = sbr.rel (0) target = $region5
    $region4: #{tpu_custom_call.1} parent=1 // pred_region
      %s23 = ssub.s32 256, 256
      %24 = vsyncadd [#allocation3], %s23
      %s25 = sshll.u32 [#allocation2], 4
      %s26 = int_to_ptr.vmem [resolvable:$true] %s25
      %31 = dma.hbm_to_vmem [thread:$0]  %s0, 256, %s26, [#allocation3], 128, 128, 8
    $region5: #{tpu_custom_call.1} parent=1 // pred_fallthru
      _
    // Predicated region
    $region6: #{tpu_custom_call.1} parent=1 // pred_check
      _
    $region7: #{tpu_custom_call.1} parent=1 // pred_check_branch
      %33 = sbr.rel (0) target = $region9
    $region8: #{tpu_custom_call.1} parent=1 // pred_region
      %s35 = ssub.s32 256, 256
      %36 = vsyncadd [#allocation6], %s35
      %s37 = sshll.u32 [#allocation5], 4
      %s38 = int_to_ptr.vmem [resolvable:$true] %s37
      %43 = dma.hbm_to_vmem [thread:$0]  %s1, 256, %s38, [#allocation6], 128, 128, 8
    $region9: #{tpu_custom_call.1} parent=1 // pred_fallthru
      _
    // Predicated region
    $region10: #{tpu_custom_call.1} parent=1 // pred_check
      _
    $region11: #{tpu_custom_call.1} parent=1 // pred_check_branch
      %45 = sbr.rel (0) target = $region13
    $region12: #{tpu_custom_call.1} parent=1 // pred_region
      %s47 = ssub.s32 32, 32
      %48 = vsyncadd [#allocation6], %s47
      %s49 = sshll.u32 [#allocation7], 4
      %s50 = int_to_ptr.vmem [resolvable:$true] %s49
      %55 = dma.hbm_to_vmem [thread:$0]  %s2, 32, %s50, [#allocation6], 16, 16, 1
    $region13: #{tpu_custom_call.1} parent=1 // pred_fallthru
      _
    // Predicated region
    $region14: #{tpu_custom_call.1} parent=1 // pred_check
      _
    $region15: #{tpu_custom_call.1} parent=1 // pred_check_branch
      %57 = sbr.rel (0) target = $region17
    $region16: #{tpu_custom_call.1} parent=1 // pred_region
      _
    $region17: #{tpu_custom_call.1} parent=1 // pred_fallthru
      _
    // Predicated region
    $region18: #{tpu_custom_call.1} parent=1 // pred_check
      _
    $region19: #{tpu_custom_call.1} parent=1 // pred_check_branch
      %59 = sbr.rel (0) target = $region21
    $region20: #{tpu_custom_call.1} parent=1 // pred_region
      _
    $region21: #{tpu_custom_call.1} parent=1 // pred_fallthru
      _
    // Predicated region
    $region22: #{tpu_custom_call.1} parent=1 // pred_check
      _
    $region23: #{tpu_custom_call.1} parent=1 // pred_check_branch
      %61 = sbr.rel (0) target = $region25
    $region24: #{tpu_custom_call.1} parent=1 // pred_region
      %s63 = ssub.s32 512, 512
      %64 = vsyncadd [#allocation9], %s63
      %s65 = sshll.u32 [#allocation8], 4
      %s66 = int_to_ptr.vmem [resolvable:$true] %s65
      %71 = dma.hbm_to_vmem [thread:$0]  %s5, 512, %s66, [#allocation9], 128, 128, 8
    $region25: #{tpu_custom_call.1} parent=1 // pred_fallthru
      _
    // Predicated region
    $region26: #{tpu_custom_call.1} parent=1 // pred_check
      _
    $region27: #{tpu_custom_call.1} parent=1 // pred_check_branch
      %73 = sbr.rel (0) target = $region29
    $region28: #{tpu_custom_call.1} parent=1 // pred_region
      %s75 = ssub.s32 512, 512
      %76 = vsyncadd [#allocation9], %s75
      %s77 = sshll.u32 [#allocation10], 4
      %s78 = int_to_ptr.vmem [resolvable:$true] %s77
      %83 = dma.hbm_to_vmem [thread:$0]  %s6, 512, %s78, [#allocation9], 128, 128, 8
    $region29: #{tpu_custom_call.1} parent=1 // pred_fallthru
      _
    // Predicated region
    $region30: #{tpu_custom_call.1} parent=1 // pred_check
      _
    $region31: #{tpu_custom_call.1} parent=1 // pred_check_branch
      %85 = sbr.rel (0) target = $region33
    $region32: #{tpu_custom_call.1} parent=1 // pred_region
      _
    $region33: #{tpu_custom_call.1} parent=1 // pred_fallthru
      _
    // Predicated region
    $region34: #{tpu_custom_call.1} parent=1 // pred_check
      _
    $region35: #{tpu_custom_call.1} parent=1 // pred_check_branch
      %87 = sbr.rel (0) target = $region37
    $region36: #{tpu_custom_call.1} parent=1 // pred_region
      %88 = dma.done [#allocation3], 256
    $region37: #{tpu_custom_call.1} parent=1 // pred_fallthru
      _
    // Predicated region
    $region38: #{tpu_custom_call.1} parent=1 // pred_check
      _
    $region39: #{tpu_custom_call.1} parent=1 // pred_check_branch
      %90 = sbr.rel (0) target = $region41
    $region40: #{tpu_custom_call.1} parent=1 // pred_region
      %91 = dma.done [#allocation6], 256
    $region41: #{tpu_custom_call.1} parent=1 // pred_fallthru
      _
    // Predicated region
    $region42: #{tpu_custom_call.1} parent=1 // pred_check
      _
    $region43: #{tpu_custom_call.1} parent=1 // pred_check_branch
      %93 = sbr.rel (0) target = $region45
    $region44: #{tpu_custom_call.1} parent=1 // pred_region
      %94 = dma.done [#allocation6], 32
    $region45: #{tpu_custom_call.1} parent=1 // pred_fallthru
      _
    // Predicated region
    $region46: #{tpu_custom_call.1} parent=1 // pred_check
      _
    $region47: #{tpu_custom_call.1} parent=1 // pred_check_branch
      %96 = sbr.rel (0) target = $region49
    $region48: #{tpu_custom_call.1} parent=1 // pred_region
      %97 = dma.done [#allocation9], 512
    $region49: #{tpu_custom_call.1} parent=1 // pred_fallthru
      _
    // Predicated region
    $region50: #{tpu_custom_call.1} parent=1 // pred_check
      _
    $region51: #{tpu_custom_call.1} parent=1 // pred_check_branch
      %99 = sbr.rel (0) target = $region53
    $region52: #{tpu_custom_call.1} parent=1 // pred_region
      %100 = dma.done [#allocation9], 512
    $region53: #{tpu_custom_call.1} parent=1 // pred_fallthru
      _
    %v101 = vld [vmem:[#allocation2] sm:$0xff]
    %v102 = vld [vmem:[#allocation2 + $0x8] sm:$0xff]
    %v103 = vld [vmem:[#allocation5] sm:$0xff]
    %v104 = vld [vmem:[#allocation5 + $0x8] sm:$0xff]
    %v105 = vld [vmem:[%s7] sm:$0x3f]
    %v106 = vld [vmem:[%s4] sm:$0xff]
    %v107 = vld [vmem:[%s4 + $0x8] sm:$0xff]
    %v108 = vld [vmem:[%s4 + $0x10] sm:$0xff]
    %v109 = vld [vmem:[%s4 + $0x18] sm:$0xff]
    %v110 = vlaneseq
    %v111 = vshrl.u32 %v110, 7
    %v112 = vsub.s32 0, %v111
    %v113 = vrot.slane %v105, %v112
    %vm114 = vcmask 261120
    %v116 = vsel %vm114, %v101, 0
    %v119 = vsel %vm114, %v102, 0
    %121 = vmatprep.subr.mxu0 0.0
    %122 = vmatpush1.msra.mxu0 %v106
    %123 = vmatprep.subr.mxu0 0.0
    %124 = vmatpush1.msra.mxu0 %v107
    %125 = vmatprep.subr.mxu0 0.0
    %126 = vmatpush1.msra.mxu0 %v108
    %127 = vmatprep.subr.mxu0 0.0
    %128 = vmatpush1.msra.mxu0 %v109
    %129 = vmatprep.subr.mxu0 0.0
    %130 = vmatpush1.msra.mxu0 0.0
    %131 = vmatprep.subr.mxu0 0.0
    %132 = vmatpush1.msra.mxu0 0.0
    %133 = vmatprep.subr.mxu0 0.0
    %134 = vmatpush1.msra.mxu0 0.0
    %135 = vmatprep.subr.mxu0 0.0
    %136 = vmatpush1.msra.mxu0 0.0
    %137 = vmatprep.subr.mxu0 0.0
    %138 = vmatpush1.msra.mxu0 0.0
    %139 = vmatprep.subr.mxu0 0.0
    %140 = vmatpush1.msra.mxu0 0.0
    %141 = vmatprep.subr.mxu0 0.0
    %142 = vmatpush1.msra.mxu0 0.0
    %143 = vmatprep.subr.mxu0 0.0
    %144 = vmatpush1.msra.mxu0 0.0
    %145 = vmatprep.subr.mxu0 0.0
    %146 = vmatpush1.msra.mxu0 0.0
    %147 = vmatprep.subr.mxu0 0.0
    %148 = vmatpush1.msra.mxu0 0.0
    %149 = vmatprep.subr.mxu0 0.0
    %150 = vmatpush1.msra.mxu0 0.0
    %151 = vmatprep.subr.mxu0 0.0
    %152 = vmatpush1.msra.mxu0 0.0
    %153 = vmatprep.subr.mxu0 0.0
    %154 = vmatpush1.msra.mxu0 0.0
    %155 = vmatprep.subr.mxu0 0.0
    %156 = vmatpush1.msra.mxu0 0.0
    %157 = vmatprep.subr.mxu0 0.0
    %158 = vmatpush1.msra.mxu0 0.0
    %159 = vmatprep.subr.mxu0 0.0
    %160 = vmatpush1.msra.mxu0 0.0
    %161 = vmatprep.subr.mxu0 0.0
    %162 = vmatpush1.msra.mxu0 0.0
    %163 = vmatprep.subr.mxu0 0.0
    %164 = vmatpush1.msra.mxu0 0.0
    %165 = vmatprep.subr.mxu0 0.0
    %166 = vmatpush1.msra.mxu0 0.0
    %167 = vmatprep.subr.mxu0 0.0
    %168 = vmatpush1.msra.mxu0 0.0
    %169 = vmatprep.subr.mxu0 0.0
    %170 = vmatpush1.msra.mxu0 0.0
    %171 = vmatprep.subr.mxu0 0.0
    %172 = vmatpush1.msra.mxu0 0.0
    %173 = vmatprep.subr.mxu0 0.0
    %174 = vmatpush1.msra.mxu0 0.0
    %175 = vmatprep.subr.mxu0 0.0
    %176 = vmatpush1.msra.mxu0 0.0
    %177 = vmatprep.subr.mxu0 0.0
    %178 = vmatpush1.msra.mxu0 0.0
    %179 = vmatprep.subr.mxu0 0.0
    %180 = vmatpush1.msra.mxu0 0.0
    %181 = vmatprep.subr.mxu0 0.0
    %182 = vmatpush1.msra.mxu0 0.0
    %183 = vmatprep.subr.mxu0 0.0
    %184 = vmatpush1.msra.mxu0 0.0
    %185 = vmatprep.mubr.f32.mxu0 0.0
    %186 = vmatmul.mubr.f32.gmra.mrb[0].mxu0 %v116
    %v187 = vpop.f32.mrb[0].mxu0
    %v188 = vadd.f32 %v113, %v187
    %v189 = vpop.f32.mrb[0].mxu0
    %190 = vmatprep.mubr.f32.mxu0 0.0
    %191 = vmatmul.mubr.f32.gmra.mrb[0].mxu0 %v119
    %v192 = vpop.f32.mrb[0].mxu0
    %v193 = vadd.f32 %v113, %v192
    %v194 = vpop.f32.mrb[0].mxu0
    %195 = vdwg.mxu0
    %v196 = vld [vmem:[#allocation8] sm:$0xff]
    %v197 = vld [vmem:[#allocation8 + $0x8] sm:$0xff]
    %v198 = vld [vmem:[#allocation8 + $0x10] sm:$0xff]
    %v199 = vld [vmem:[#allocation8 + $0x18] sm:$0xff]
    %v201 = vsel %vm114, %v103, 0
    %v204 = vsel %vm114, %v104, 0
    %206 = vmatprep.subr.mxu0 0.0
    %207 = vmatpush1.msra.mxu0 %v196
    %208 = vmatprep.subr.mxu0 0.0
    %209 = vmatpush1.msra.mxu0 %v197
    %210 = vmatprep.subr.mxu0 0.0
    %211 = vmatpush1.msra.mxu0 %v198
    %212 = vmatprep.subr.mxu0 0.0
    %213 = vmatpush1.msra.mxu0 %v199
    %214 = vmatprep.subr.mxu0 0.0
    %215 = vmatpush1.msra.mxu0 0.0
    %216 = vmatprep.subr.mxu0 0.0
    %217 = vmatpush1.msra.mxu0 0.0
    %218 = vmatprep.subr.mxu0 0.0
    %219 = vmatpush1.msra.mxu0 0.0
    %220 = vmatprep.subr.mxu0 0.0
    %221 = vmatpush1.msra.mxu0 0.0
    %222 = vmatprep.subr.mxu0 0.0
    %223 = vmatpush1.msra.mxu0 0.0
    %224 = vmatprep.subr.mxu0 0.0
    %225 = vmatpush1.msra.mxu0 0.0
    %226 = vmatprep.subr.mxu0 0.0
    %227 = vmatpush1.msra.mxu0 0.0
    %228 = vmatprep.subr.mxu0 0.0
    %229 = vmatpush1.msra.mxu0 0.0
    %230 = vmatprep.subr.mxu0 0.0
    %231 = vmatpush1.msra.mxu0 0.0
    %232 = vmatprep.subr.mxu0 0.0
    %233 = vmatpush1.msra.mxu0 0.0
    %234 = vmatprep.subr.mxu0 0.0
    %235 = vmatpush1.msra.mxu0 0.0
    %236 = vmatprep.subr.mxu0 0.0
    %237 = vmatpush1.msra.mxu0 0.0
    %238 = vmatprep.subr.mxu0 0.0
    %239 = vmatpush1.msra.mxu0 0.0
    %240 = vmatprep.subr.mxu0 0.0
    %241 = vmatpush1.msra.mxu0 0.0
    %242 = vmatprep.subr.mxu0 0.0
    %243 = vmatpush1.msra.mxu0 0.0
    %244 = vmatprep.subr.mxu0 0.0
    %245 = vmatpush1.msra.mxu0 0.0
    %246 = vmatprep.subr.mxu0 0.0
    %247 = vmatpush1.msra.mxu0 0.0
    %248 = vmatprep.subr.mxu0 0.0
    %249 = vmatpush1.msra.mxu0 0.0
    %250 = vmatprep.subr.mxu0 0.0
    %251 = vmatpush1.msra.mxu0 0.0
    %252 = vmatprep.subr.mxu0 0.0
    %253 = vmatpush1.msra.mxu0 0.0
    %254 = vmatprep.subr.mxu0 0.0
    %255 = vmatpush1.msra.mxu0 0.0
    %256 = vmatprep.subr.mxu0 0.0
    %257 = vmatpush1.msra.mxu0 0.0
    %258 = vmatprep.subr.mxu0 0.0
    %259 = vmatpush1.msra.mxu0 0.0
    %260 = vmatprep.subr.mxu0 0.0
    %261 = vmatpush1.msra.mxu0 0.0
    %262 = vmatprep.subr.mxu0 0.0
    %263 = vmatpush1.msra.mxu0 0.0
    %264 = vmatprep.subr.mxu0 0.0
    %265 = vmatpush1.msra.mxu0 0.0
    %266 = vmatprep.subr.mxu0 0.0
    %267 = vmatpush1.msra.mxu0 0.0
    %268 = vmatprep.subr.mxu0 0.0
    %269 = vmatpush1.msra.mxu0 0.0
    %270 = vmatprep.mubr.f32.mxu0 0.0
    %271 = vmatmul.mubr.f32.gmra.mrb[0].mxu0 %v201
    %v272 = vpop.f32.mrb[0].mxu0
    %v273 = vadd.f32 0.0, %v272
    %v274 = vpop.f32.mrb[0].mxu0
    %275 = vmatprep.mubr.f32.mxu0 0.0
    %276 = vmatmul.mubr.f32.gmra.mrb[0].mxu0 %v204
    %v277 = vpop.f32.mrb[0].mxu0
    %v278 = vadd.f32 0.0, %v277
    %v279 = vpop.f32.mrb[0].mxu0
    %280 = vdwg.mxu0
    %v281 = vlaneseq
    %v282 = vshrl.u32 %v281, 7
    %v283 = vsub.s32 1, %v282
    %v284 = vrot.slane %v105, %v283
    %v285 = vadd.f32 %v273, %v284
    %v286 = vadd.f32 %v278, %v284
    %v287 = vlaneseq
    %v288 = vshrl.u32 %v287, 7
    %v289 = vsub.s32 2, %v288
    %v290 = vrot.slane %v105, %v289
    %292 = vrot.lane.b32.xlu0 %v290, 32
    %v293 = vpop.permute.xlu0 %292
    %v295 = vadd.f32 %v273, %v293
    %v296 = vadd.f32 %v278, %v293
    %299 = vrot.lane.b32.xlu0 %v188, 120
    %v300 = vpop.permute.xlu0 %299
    %301 = vrot.lane.b32.xlu0 %v193, 120
    %v302 = vpop.permute.xlu0 %301
    %303 = vrot.lane.b32.xlu0 %v188, 112
    %v304 = vpop.permute.xlu0 %303
    %305 = vrot.lane.b32.xlu0 %v193, 112
    %v306 = vpop.permute.xlu0 %305
    %307 = vrot.lane.b32.xlu0 %v188, 104
    %v308 = vpop.permute.xlu0 %307
    %309 = vrot.lane.b32.xlu0 %v193, 104
    %v310 = vpop.permute.xlu0 %309
    %313 = vrot.lane.b32.xlu0 %v285, 120
    %v314 = vpop.permute.xlu0 %313
    %315 = vrot.lane.b32.xlu0 %v286, 120
    %v316 = vpop.permute.xlu0 %315
    %317 = vrot.lane.b32.xlu0 %v285, 112
    %v318 = vpop.permute.xlu0 %317
    %319 = vrot.lane.b32.xlu0 %v286, 112
    %v320 = vpop.permute.xlu0 %319
    %321 = vrot.lane.b32.xlu0 %v285, 104
    %v322 = vpop.permute.xlu0 %321
    %323 = vrot.lane.b32.xlu0 %v286, 104
    %v324 = vpop.permute.xlu0 %323
    %327 = vrot.lane.b32.xlu0 %v295, 120
    %v328 = vpop.permute.xlu0 %327
    %329 = vrot.lane.b32.xlu0 %v296, 120
    %v330 = vpop.permute.xlu0 %329
    %331 = vrot.lane.b32.xlu0 %v295, 112
    %v332 = vpop.permute.xlu0 %331
    %333 = vrot.lane.b32.xlu0 %v296, 112
    %v334 = vpop.permute.xlu0 %333
    %335 = vrot.lane.b32.xlu0 %v295, 104
    %v336 = vpop.permute.xlu0 %335
    %337 = vrot.lane.b32.xlu0 %v296, 104
    %v338 = vpop.permute.xlu0 %337
    %vm339 = vcmask 64512
    %v340 = vsel %vm339, %v188, 0
    %v342 = vsel %vm339, %v285, 0
    %344 = vmatprep.subr.mxu0 0.0
    %345 = vmatpush1.xpose.msra.mxu0 %v342
    %346 = vmatprep.subr.mxu0 0.0
    %347 = vmatpush1.xpose.msra.mxu0 0.0
    %348 = vmatprep.subr.mxu0 0.0
    %349 = vmatpush1.xpose.msra.mxu0 0.0
    %350 = vmatprep.subr.mxu0 0.0
    %351 = vmatpush1.xpose.msra.mxu0 0.0
    %352 = vmatprep.subr.mxu0 0.0
    %353 = vmatpush1.xpose.msra.mxu0 0.0
    %354 = vmatprep.subr.mxu0 0.0
    %355 = vmatpush1.xpose.msra.mxu0 0.0
    %356 = vmatprep.subr.mxu0 0.0
    %357 = vmatpush1.xpose.msra.mxu0 0.0
    %358 = vmatprep.subr.mxu0 0.0
    %359 = vmatpush1.xpose.msra.mxu0 0.0
    %360 = vmatprep.subr.mxu0 0.0
    %361 = vmatpush1.xpose.msra.mxu0 0.0
    %362 = vmatprep.subr.mxu0 0.0
    %363 = vmatpush1.xpose.msra.mxu0 0.0
    %364 = vmatprep.subr.mxu0 0.0
    %365 = vmatpush1.xpose.msra.mxu0 0.0
    %366 = vmatprep.subr.mxu0 0.0
    %367 = vmatpush1.xpose.msra.mxu0 0.0
    %368 = vmatprep.subr.mxu0 0.0
    %369 = vmatpush1.xpose.msra.mxu0 0.0
    %370 = vmatprep.subr.mxu0 0.0
    %371 = vmatpush1.xpose.msra.mxu0 0.0
    %372 = vmatprep.subr.mxu0 0.0
    %373 = vmatpush1.xpose.msra.mxu0 0.0
    %374 = vmatprep.subr.mxu0 0.0
    %375 = vmatpush1.xpose.msra.mxu0 0.0
    %376 = vmatprep.subr.mxu0 0.0
    %377 = vmatpush1.xpose.msra.mxu0 0.0
    %378 = vmatprep.subr.mxu0 0.0
    %379 = vmatpush1.xpose.msra.mxu0 0.0
    %380 = vmatprep.subr.mxu0 0.0
    %381 = vmatpush1.xpose.msra.mxu0 0.0
    %382 = vmatprep.subr.mxu0 0.0
    %383 = vmatpush1.xpose.msra.mxu0 0.0
    %384 = vmatprep.subr.mxu0 0.0
    %385 = vmatpush1.xpose.msra.mxu0 0.0
    %386 = vmatprep.subr.mxu0 0.0
    %387 = vmatpush1.xpose.msra.mxu0 0.0
    %388 = vmatprep.subr.mxu0 0.0
    %389 = vmatpush1.xpose.msra.mxu0 0.0
    %390 = vmatprep.subr.mxu0 0.0
    %391 = vmatpush1.xpose.msra.mxu0 0.0
    %392 = vmatprep.subr.mxu0 0.0
    %393 = vmatpush1.xpose.msra.mxu0 0.0
    %394 = vmatprep.subr.mxu0 0.0
    %395 = vmatpush1.xpose.msra.mxu0 0.0
    %396 = vmatprep.subr.mxu0 0.0
    %397 = vmatpush1.xpose.msra.mxu0 0.0
    %398 = vmatprep.subr.mxu0 0.0
    %399 = vmatpush1.xpose.msra.mxu0 0.0
    %400 = vmatprep.subr.mxu0 0.0
    %401 = vmatpush1.xpose.msra.mxu0 0.0
    %402 = vmatprep.subr.mxu0 0.0
    %403 = vmatpush1.xpose.msra.mxu0 0.0
    %404 = vmatprep.subr.mxu0 0.0
    %405 = vmatpush1.xpose.msra.mxu0 0.0
    %406 = vmatprep.subr.mxu0 0.0
    %407 = vmatpush1.xpose.msra.mxu0 0.0
    %408 = vmatprep.mubr.f32.mxu0 0.0
    %409 = vmatmul.mubr.f32.gmra.mrb[0].mxu0 %v340
    %v410 = vpop.f32.mrb[0].mxu0
    %v411 = vadd.f32 0.0, %v410
    %v412 = vpop.f32.mrb[0].mxu0
    %413 = vdwg.mxu0
    %v414 = vsel %vm339, %v300, 0
    %v416 = vsel %vm339, %v314, 0
    %418 = vmatprep.subr.mxu0 0.0
    %419 = vmatpush1.xpose.msra.mxu0 %v416
    %420 = vmatprep.subr.mxu0 0.0
    %421 = vmatpush1.xpose.msra.mxu0 0.0
    %422 = vmatprep.subr.mxu0 0.0
    %423 = vmatpush1.xpose.msra.mxu0 0.0
    %424 = vmatprep.subr.mxu0 0.0
    %425 = vmatpush1.xpose.msra.mxu0 0.0
    %426 = vmatprep.subr.mxu0 0.0
    %427 = vmatpush1.xpose.msra.mxu0 0.0
    %428 = vmatprep.subr.mxu0 0.0
    %429 = vmatpush1.xpose.msra.mxu0 0.0
    %430 = vmatprep.subr.mxu0 0.0
    %431 = vmatpush1.xpose.msra.mxu0 0.0
    %432 = vmatprep.subr.mxu0 0.0
    %433 = vmatpush1.xpose.msra.mxu0 0.0
    %434 = vmatprep.subr.mxu0 0.0
    %435 = vmatpush1.xpose.msra.mxu0 0.0
    %436 = vmatprep.subr.mxu0 0.0
    %437 = vmatpush1.xpose.msra.mxu0 0.0
    %438 = vmatprep.subr.mxu0 0.0
    %439 = vmatpush1.xpose.msra.mxu0 0.0
    %440 = vmatprep.subr.mxu0 0.0
    %441 = vmatpush1.xpose.msra.mxu0 0.0
    %442 = vmatprep.subr.mxu0 0.0
    %443 = vmatpush1.xpose.msra.mxu0 0.0
    %444 = vmatprep.subr.mxu0 0.0
    %445 = vmatpush1.xpose.msra.mxu0 0.0
    %446 = vmatprep.subr.mxu0 0.0
    %447 = vmatpush1.xpose.msra.mxu0 0.0
    %448 = vmatprep.subr.mxu0 0.0
    %449 = vmatpush1.xpose.msra.mxu0 0.0
    %450 = vmatprep.subr.mxu0 0.0
    %451 = vmatpush1.xpose.msra.mxu0 0.0
    %452 = vmatprep.subr.mxu0 0.0
    %453 = vmatpush1.xpose.msra.mxu0 0.0
    %454 = vmatprep.subr.mxu0 0.0
    %455 = vmatpush1.xpose.msra.mxu0 0.0
    %456 = vmatprep.subr.mxu0 0.0
    %457 = vmatpush1.xpose.msra.mxu0 0.0
    %458 = vmatprep.subr.mxu0 0.0
    %459 = vmatpush1.xpose.msra.mxu0 0.0
    %460 = vmatprep.subr.mxu0 0.0
    %461 = vmatpush1.xpose.msra.mxu0 0.0
    %462 = vmatprep.subr.mxu0 0.0
    %463 = vmatpush1.xpose.msra.mxu0 0.0
    %464 = vmatprep.subr.mxu0 0.0
    %465 = vmatpush1.xpose.msra.mxu0 0.0
    %466 = vmatprep.subr.mxu0 0.0
    %467 = vmatpush1.xpose.msra.mxu0 0.0
    %468 = vmatprep.subr.mxu0 0.0
    %469 = vmatpush1.xpose.msra.mxu0 0.0
    %470 = vmatprep.subr.mxu0 0.0
    %471 = vmatpush1.xpose.msra.mxu0 0.0
    %472 = vmatprep.subr.mxu0 0.0
    %473 = vmatpush1.xpose.msra.mxu0 0.0
    %474 = vmatprep.subr.mxu0 0.0
    %475 = vmatpush1.xpose.msra.mxu0 0.0
    %476 = vmatprep.subr.mxu0 0.0
    %477 = vmatpush1.xpose.msra.mxu0 0.0
    %478 = vmatprep.subr.mxu0 0.0
    %479 = vmatpush1.xpose.msra.mxu0 0.0
    %480 = vmatprep.subr.mxu0 0.0
    %481 = vmatpush1.xpose.msra.mxu0 0.0
    %482 = vmatprep.mubr.f32.mxu0 0.0
    %483 = vmatmul.mubr.f32.gmra.mrb[0].mxu0 %v414
    %v484 = vpop.f32.mrb[0].mxu0
    %v485 = vadd.f32 0.0, %v484
    %v486 = vpop.f32.mrb[0].mxu0
    %487 = vdwg.mxu0
    %v488 = vsel %vm339, %v304, 0
    %v490 = vsel %vm339, %v318, 0
    %492 = vmatprep.subr.mxu0 0.0
    %493 = vmatpush1.xpose.msra.mxu0 %v490
    %494 = vmatprep.subr.mxu0 0.0
    %495 = vmatpush1.xpose.msra.mxu0 0.0
    %496 = vmatprep.subr.mxu0 0.0
    %497 = vmatpush1.xpose.msra.mxu0 0.0
    %498 = vmatprep.subr.mxu0 0.0
    %499 = vmatpush1.xpose.msra.mxu0 0.0
    %500 = vmatprep.subr.mxu0 0.0
    %501 = vmatpush1.xpose.msra.mxu0 0.0
    %502 = vmatprep.subr.mxu0 0.0
    %503 = vmatpush1.xpose.msra.mxu0 0.0
    %504 = vmatprep.subr.mxu0 0.0
    %505 = vmatpush1.xpose.msra.mxu0 0.0
    %506 = vmatprep.subr.mxu0 0.0
    %507 = vmatpush1.xpose.msra.mxu0 0.0
    %508 = vmatprep.subr.mxu0 0.0
    %509 = vmatpush1.xpose.msra.mxu0 0.0
    %510 = vmatprep.subr.mxu0 0.0
    %511 = vmatpush1.xpose.msra.mxu0 0.0
    %512 = vmatprep.subr.mxu0 0.0
    %513 = vmatpush1.xpose.msra.mxu0 0.0
    %514 = vmatprep.subr.mxu0 0.0
    %515 = vmatpush1.xpose.msra.mxu0 0.0
    %516 = vmatprep.subr.mxu0 0.0
    %517 = vmatpush1.xpose.msra.mxu0 0.0
    %518 = vmatprep.subr.mxu0 0.0
    %519 = vmatpush1.xpose.msra.mxu0 0.0
    %520 = vmatprep.subr.mxu0 0.0
    %521 = vmatpush1.xpose.msra.mxu0 0.0
    %522 = vmatprep.subr.mxu0 0.0
    %523 = vmatpush1.xpose.msra.mxu0 0.0
    %524 = vmatprep.subr.mxu0 0.0
    %525 = vmatpush1.xpose.msra.mxu0 0.0
    %526 = vmatprep.subr.mxu0 0.0
    %527 = vmatpush1.xpose.msra.mxu0 0.0
    %528 = vmatprep.subr.mxu0 0.0
    %529 = vmatpush1.xpose.msra.mxu0 0.0
    %530 = vmatprep.subr.mxu0 0.0
    %531 = vmatpush1.xpose.msra.mxu0 0.0
    %532 = vmatprep.subr.mxu0 0.0
    %533 = vmatpush1.xpose.msra.mxu0 0.0
    %534 = vmatprep.subr.mxu0 0.0
    %535 = vmatpush1.xpose.msra.mxu0 0.0
    %536 = vmatprep.subr.mxu0 0.0
    %537 = vmatpush1.xpose.msra.mxu0 0.0
    %538 = vmatprep.subr.mxu0 0.0
    %539 = vmatpush1.xpose.msra.mxu0 0.0
    %540 = vmatprep.subr.mxu0 0.0
    %541 = vmatpush1.xpose.msra.mxu0 0.0
    %542 = vmatprep.subr.mxu0 0.0
    %543 = vmatpush1.xpose.msra.mxu0 0.0
    %544 = vmatprep.subr.mxu0 0.0
    %545 = vmatpush1.xpose.msra.mxu0 0.0
    %546 = vmatprep.subr.mxu0 0.0
    %547 = vmatpush1.xpose.msra.mxu0 0.0
    %548 = vmatprep.subr.mxu0 0.0
    %549 = vmatpush1.xpose.msra.mxu0 0.0
    %550 = vmatprep.subr.mxu0 0.0
    %551 = vmatpush1.xpose.msra.mxu0 0.0
    %552 = vmatprep.subr.mxu0 0.0
    %553 = vmatpush1.xpose.msra.mxu0 0.0
    %554 = vmatprep.subr.mxu0 0.0
    %555 = vmatpush1.xpose.msra.mxu0 0.0
    %556 = vmatprep.mubr.f32.mxu0 0.0
    %557 = vmatmul.mubr.f32.gmra.mrb[0].mxu0 %v488
    %v558 = vpop.f32.mrb[0].mxu0
    %v559 = vadd.f32 0.0, %v558
    %v560 = vpop.f32.mrb[0].mxu0
    %561 = vdwg.mxu0
    %v562 = vsel %vm339, %v308, 0
    %v564 = vsel %vm339, %v322, 0
    %566 = vmatprep.subr.mxu0 0.0
    %567 = vmatpush1.xpose.msra.mxu0 %v564
    %568 = vmatprep.subr.mxu0 0.0
    %569 = vmatpush1.xpose.msra.mxu0 0.0
    %570 = vmatprep.subr.mxu0 0.0
    %571 = vmatpush1.xpose.msra.mxu0 0.0
    %572 = vmatprep.subr.mxu0 0.0
    %573 = vmatpush1.xpose.msra.mxu0 0.0
    %574 = vmatprep.subr.mxu0 0.0
    %575 = vmatpush1.xpose.msra.mxu0 0.0
    %576 = vmatprep.subr.mxu0 0.0
    %577 = vmatpush1.xpose.msra.mxu0 0.0
    %578 = vmatprep.subr.mxu0 0.0
    %579 = vmatpush1.xpose.msra.mxu0 0.0
    %580 = vmatprep.subr.mxu0 0.0
    %581 = vmatpush1.xpose.msra.mxu0 0.0
    %582 = vmatprep.subr.mxu0 0.0
    %583 = vmatpush1.xpose.msra.mxu0 0.0
    %584 = vmatprep.subr.mxu0 0.0
    %585 = vmatpush1.xpose.msra.mxu0 0.0
    %586 = vmatprep.subr.mxu0 0.0
    %587 = vmatpush1.xpose.msra.mxu0 0.0
    %588 = vmatprep.subr.mxu0 0.0
    %589 = vmatpush1.xpose.msra.mxu0 0.0
    %590 = vmatprep.subr.mxu0 0.0
    %591 = vmatpush1.xpose.msra.mxu0 0.0
    %592 = vmatprep.subr.mxu0 0.0
    %593 = vmatpush1.xpose.msra.mxu0 0.0
    %594 = vmatprep.subr.mxu0 0.0
    %595 = vmatpush1.xpose.msra.mxu0 0.0
    %596 = vmatprep.subr.mxu0 0.0
    %597 = vmatpush1.xpose.msra.mxu0 0.0
    %598 = vmatprep.subr.mxu0 0.0
    %599 = vmatpush1.xpose.msra.mxu0 0.0
    %600 = vmatprep.subr.mxu0 0.0
    %601 = vmatpush1.xpose.msra.mxu0 0.0
    %602 = vmatprep.subr.mxu0 0.0
    %603 = vmatpush1.xpose.msra.mxu0 0.0
    %604 = vmatprep.subr.mxu0 0.0
    %605 = vmatpush1.xpose.msra.mxu0 0.0
    %606 = vmatprep.subr.mxu0 0.0
    %607 = vmatpush1.xpose.msra.mxu0 0.0
    %608 = vmatprep.subr.mxu0 0.0
    %609 = vmatpush1.xpose.msra.mxu0 0.0
    %610 = vmatprep.subr.mxu0 0.0
    %611 = vmatpush1.xpose.msra.mxu0 0.0
    %612 = vmatprep.subr.mxu0 0.0
    %613 = vmatpush1.xpose.msra.mxu0 0.0
    %614 = vmatprep.subr.mxu0 0.0
    %615 = vmatpush1.xpose.msra.mxu0 0.0
    %616 = vmatprep.subr.mxu0 0.0
    %617 = vmatpush1.xpose.msra.mxu0 0.0
    %618 = vmatprep.subr.mxu0 0.0
    %619 = vmatpush1.xpose.msra.mxu0 0.0
    %620 = vmatprep.subr.mxu0 0.0
    %621 = vmatpush1.xpose.msra.mxu0 0.0
    %622 = vmatprep.subr.mxu0 0.0
    %623 = vmatpush1.xpose.msra.mxu0 0.0
    %624 = vmatprep.subr.mxu0 0.0
    %625 = vmatpush1.xpose.msra.mxu0 0.0
    %626 = vmatprep.subr.mxu0 0.0
    %627 = vmatpush1.xpose.msra.mxu0 0.0
    %628 = vmatprep.subr.mxu0 0.0
    %629 = vmatpush1.xpose.msra.mxu0 0.0
    %630 = vmatprep.mubr.f32.mxu0 0.0
    %631 = vmatmul.mubr.f32.gmra.mrb[0].mxu0 %v562
    %v632 = vpop.f32.mrb[0].mxu0
    %v633 = vadd.f32 0.0, %v632
    %v634 = vpop.f32.mrb[0].mxu0
    %635 = vdwg.mxu0
    %v636 = vsel %vm339, %v193, 0
    %v638 = vsel %vm339, %v286, 0
    %640 = vmatprep.subr.mxu0 0.0
    %641 = vmatpush1.xpose.msra.mxu0 %v638
    %642 = vmatprep.subr.mxu0 0.0
    %643 = vmatpush1.xpose.msra.mxu0 0.0
    %644 = vmatprep.subr.mxu0 0.0
    %645 = vmatpush1.xpose.msra.mxu0 0.0
    %646 = vmatprep.subr.mxu0 0.0
    %647 = vmatpush1.xpose.msra.mxu0 0.0
    %648 = vmatprep.subr.mxu0 0.0
    %649 = vmatpush1.xpose.msra.mxu0 0.0
    %650 = vmatprep.subr.mxu0 0.0
    %651 = vmatpush1.xpose.msra.mxu0 0.0
    %652 = vmatprep.subr.mxu0 0.0
    %653 = vmatpush1.xpose.msra.mxu0 0.0
    %654 = vmatprep.subr.mxu0 0.0
    %655 = vmatpush1.xpose.msra.mxu0 0.0
    %656 = vmatprep.subr.mxu0 0.0
    %657 = vmatpush1.xpose.msra.mxu0 0.0
    %658 = vmatprep.subr.mxu0 0.0
    %659 = vmatpush1.xpose.msra.mxu0 0.0
    %660 = vmatprep.subr.mxu0 0.0
    %661 = vmatpush1.xpose.msra.mxu0 0.0
    %662 = vmatprep.subr.mxu0 0.0
    %663 = vmatpush1.xpose.msra.mxu0 0.0
    %664 = vmatprep.subr.mxu0 0.0
    %665 = vmatpush1.xpose.msra.mxu0 0.0
    %666 = vmatprep.subr.mxu0 0.0
    %667 = vmatpush1.xpose.msra.mxu0 0.0
    %668 = vmatprep.subr.mxu0 0.0
    %669 = vmatpush1.xpose.msra.mxu0 0.0
    %670 = vmatprep.subr.mxu0 0.0
    %671 = vmatpush1.xpose.msra.mxu0 0.0
    %672 = vmatprep.subr.mxu0 0.0
    %673 = vmatpush1.xpose.msra.mxu0 0.0
    %674 = vmatprep.subr.mxu0 0.0
    %675 = vmatpush1.xpose.msra.mxu0 0.0
    %676 = vmatprep.subr.mxu0 0.0
    %677 = vmatpush1.xpose.msra.mxu0 0.0
    %678 = vmatprep.subr.mxu0 0.0
    %679 = vmatpush1.xpose.msra.mxu0 0.0
    %680 = vmatprep.subr.mxu0 0.0
    %681 = vmatpush1.xpose.msra.mxu0 0.0
    %682 = vmatprep.subr.mxu0 0.0
    %683 = vmatpush1.xpose.msra.mxu0 0.0
    %684 = vmatprep.subr.mxu0 0.0
    %685 = vmatpush1.xpose.msra.mxu0 0.0
    %686 = vmatprep.subr.mxu0 0.0
    %687 = vmatpush1.xpose.msra.mxu0 0.0
    %688 = vmatprep.subr.mxu0 0.0
    %689 = vmatpush1.xpose.msra.mxu0 0.0
    %690 = vmatprep.subr.mxu0 0.0
    %691 = vmatpush1.xpose.msra.mxu0 0.0
    %692 = vmatprep.subr.mxu0 0.0
    %693 = vmatpush1.xpose.msra.mxu0 0.0
    %694 = vmatprep.subr.mxu0 0.0
    %695 = vmatpush1.xpose.msra.mxu0 0.0
    %696 = vmatprep.subr.mxu0 0.0
    %697 = vmatpush1.xpose.msra.mxu0 0.0
    %698 = vmatprep.subr.mxu0 0.0
    %699 = vmatpush1.xpose.msra.mxu0 0.0
    %700 = vmatprep.subr.mxu0 0.0
    %701 = vmatpush1.xpose.msra.mxu0 0.0
    %702 = vmatprep.subr.mxu0 0.0
    %703 = vmatpush1.xpose.msra.mxu0 0.0
    %704 = vmatprep.mubr.f32.mxu0 0.0
    %705 = vmatmul.mubr.f32.gmra.mrb[0].mxu0 %v636
    %v706 = vpop.f32.mrb[0].mxu0
    %v707 = vadd.f32 0.0, %v706
    %v708 = vpop.f32.mrb[0].mxu0
    %709 = vdwg.mxu0
    %v710 = vsel %vm339, %v302, 0
    %v712 = vsel %vm339, %v316, 0
    %714 = vmatprep.subr.mxu0 0.0
    %715 = vmatpush1.xpose.msra.mxu0 %v712
    %716 = vmatprep.subr.mxu0 0.0
    %717 = vmatpush1.xpose.msra.mxu0 0.0
    %718 = vmatprep.subr.mxu0 0.0
    %719 = vmatpush1.xpose.msra.mxu0 0.0
    %720 = vmatprep.subr.mxu0 0.0
    %721 = vmatpush1.xpose.msra.mxu0 0.0
    %722 = vmatprep.subr.mxu0 0.0
    %723 = vmatpush1.xpose.msra.mxu0 0.0
    %724 = vmatprep.subr.mxu0 0.0
    %725 = vmatpush1.xpose.msra.mxu0 0.0
    %726 = vmatprep.subr.mxu0 0.0
    %727 = vmatpush1.xpose.msra.mxu0 0.0
    %728 = vmatprep.subr.mxu0 0.0
    %729 = vmatpush1.xpose.msra.mxu0 0.0
    %730 = vmatprep.subr.mxu0 0.0
    %731 = vmatpush1.xpose.msra.mxu0 0.0
    %732 = vmatprep.subr.mxu0 0.0
    %733 = vmatpush1.xpose.msra.mxu0 0.0
    %734 = vmatprep.subr.mxu0 0.0
    %735 = vmatpush1.xpose.msra.mxu0 0.0
    %736 = vmatprep.subr.mxu0 0.0
    %737 = vmatpush1.xpose.msra.mxu0 0.0
    %738 = vmatprep.subr.mxu0 0.0
    %739 = vmatpush1.xpose.msra.mxu0 0.0
    %740 = vmatprep.subr.mxu0 0.0
    %741 = vmatpush1.xpose.msra.mxu0 0.0
    %742 = vmatprep.subr.mxu0 0.0
    %743 = vmatpush1.xpose.msra.mxu0 0.0
    %744 = vmatprep.subr.mxu0 0.0
    %745 = vmatpush1.xpose.msra.mxu0 0.0
    %746 = vmatprep.subr.mxu0 0.0
    %747 = vmatpush1.xpose.msra.mxu0 0.0
    %748 = vmatprep.subr.mxu0 0.0
    %749 = vmatpush1.xpose.msra.mxu0 0.0
    %750 = vmatprep.subr.mxu0 0.0
    %751 = vmatpush1.xpose.msra.mxu0 0.0
    %752 = vmatprep.subr.mxu0 0.0
    %753 = vmatpush1.xpose.msra.mxu0 0.0
    %754 = vmatprep.subr.mxu0 0.0
    %755 = vmatpush1.xpose.msra.mxu0 0.0
    %756 = vmatprep.subr.mxu0 0.0
    %757 = vmatpush1.xpose.msra.mxu0 0.0
    %758 = vmatprep.subr.mxu0 0.0
    %759 = vmatpush1.xpose.msra.mxu0 0.0
    %760 = vmatprep.subr.mxu0 0.0
    %761 = vmatpush1.xpose.msra.mxu0 0.0
    %762 = vmatprep.subr.mxu0 0.0
    %763 = vmatpush1.xpose.msra.mxu0 0.0
    %764 = vmatprep.subr.mxu0 0.0
    %765 = vmatpush1.xpose.msra.mxu0 0.0
    %766 = vmatprep.subr.mxu0 0.0
    %767 = vmatpush1.xpose.msra.mxu0 0.0
    %768 = vmatprep.subr.mxu0 0.0
    %769 = vmatpush1.xpose.msra.mxu0 0.0
    %770 = vmatprep.subr.mxu0 0.0
    %771 = vmatpush1.xpose.msra.mxu0 0.0
    %772 = vmatprep.subr.mxu0 0.0
    %773 = vmatpush1.xpose.msra.mxu0 0.0
    %774 = vmatprep.subr.mxu0 0.0
    %775 = vmatpush1.xpose.msra.mxu0 0.0
    %776 = vmatprep.subr.mxu0 0.0
    %777 = vmatpush1.xpose.msra.mxu0 0.0
    %778 = vmatprep.mubr.f32.mxu0 0.0
    %779 = vmatmul.mubr.f32.gmra.mrb[0].mxu0 %v710
    %v780 = vpop.f32.mrb[0].mxu0
    %v781 = vadd.f32 0.0, %v780
    %v782 = vpop.f32.mrb[0].mxu0
    %783 = vdwg.mxu0
    %v784 = vsel %vm339, %v306, 0
    %v786 = vsel %vm339, %v320, 0
    %788 = vmatprep.subr.mxu0 0.0
    %789 = vmatpush1.xpose.msra.mxu0 %v786
    %790 = vmatprep.subr.mxu0 0.0
    %791 = vmatpush1.xpose.msra.mxu0 0.0
    %792 = vmatprep.subr.mxu0 0.0
    %793 = vmatpush1.xpose.msra.mxu0 0.0
    %794 = vmatprep.subr.mxu0 0.0
    %795 = vmatpush1.xpose.msra.mxu0 0.0
    %796 = vmatprep.subr.mxu0 0.0
    %797 = vmatpush1.xpose.msra.mxu0 0.0
    %798 = vmatprep.subr.mxu0 0.0
    %799 = vmatpush1.xpose.msra.mxu0 0.0
    %800 = vmatprep.subr.mxu0 0.0
    %801 = vmatpush1.xpose.msra.mxu0 0.0
    %802 = vmatprep.subr.mxu0 0.0
    %803 = vmatpush1.xpose.msra.mxu0 0.0
    %804 = vmatprep.subr.mxu0 0.0
    %805 = vmatpush1.xpose.msra.mxu0 0.0
    %806 = vmatprep.subr.mxu0 0.0
    %807 = vmatpush1.xpose.msra.mxu0 0.0
    %808 = vmatprep.subr.mxu0 0.0
    %809 = vmatpush1.xpose.msra.mxu0 0.0
    %810 = vmatprep.subr.mxu0 0.0
    %811 = vmatpush1.xpose.msra.mxu0 0.0
    %812 = vmatprep.subr.mxu0 0.0
    %813 = vmatpush1.xpose.msra.mxu0 0.0
    %814 = vmatprep.subr.mxu0 0.0
    %815 = vmatpush1.xpose.msra.mxu0 0.0
    %816 = vmatprep.subr.mxu0 0.0
    %817 = vmatpush1.xpose.msra.mxu0 0.0
    %818 = vmatprep.subr.mxu0 0.0
    %819 = vmatpush1.xpose.msra.mxu0 0.0
    %820 = vmatprep.subr.mxu0 0.0
    %821 = vmatpush1.xpose.msra.mxu0 0.0
    %822 = vmatprep.subr.mxu0 0.0
    %823 = vmatpush1.xpose.msra.mxu0 0.0
    %824 = vmatprep.subr.mxu0 0.0
    %825 = vmatpush1.xpose.msra.mxu0 0.0
    %826 = vmatprep.subr.mxu0 0.0
    %827 = vmatpush1.xpose.msra.mxu0 0.0
    %828 = vmatprep.subr.mxu0 0.0
    %829 = vmatpush1.xpose.msra.mxu0 0.0
    %830 = vmatprep.subr.mxu0 0.0
    %831 = vmatpush1.xpose.msra.mxu0 0.0
    %832 = vmatprep.subr.mxu0 0.0
    %833 = vmatpush1.xpose.msra.mxu0 0.0
    %834 = vmatprep.subr.mxu0 0.0
    %835 = vmatpush1.xpose.msra.mxu0 0.0
    %836 = vmatprep.subr.mxu0 0.0
    %837 = vmatpush1.xpose.msra.mxu0 0.0
    %838 = vmatprep.subr.mxu0 0.0
    %839 = vmatpush1.xpose.msra.mxu0 0.0
    %840 = vmatprep.subr.mxu0 0.0
    %841 = vmatpush1.xpose.msra.mxu0 0.0
    %842 = vmatprep.subr.mxu0 0.0
    %843 = vmatpush1.xpose.msra.mxu0 0.0
    %844 = vmatprep.subr.mxu0 0.0
    %845 = vmatpush1.xpose.msra.mxu0 0.0
    %846 = vmatprep.subr.mxu0 0.0
    %847 = vmatpush1.xpose.msra.mxu0 0.0
    %848 = vmatprep.subr.mxu0 0.0
    %849 = vmatpush1.xpose.msra.mxu0 0.0
    %850 = vmatprep.subr.mxu0 0.0
    %851 = vmatpush1.xpose.msra.mxu0 0.0
    %852 = vmatprep.mubr.f32.mxu0 0.0
    %853 = vmatmul.mubr.f32.gmra.mrb[0].mxu0 %v784
    %v854 = vpop.f32.mrb[0].mxu0
    %v855 = vadd.f32 0.0, %v854
    %v856 = vpop.f32.mrb[0].mxu0
    %857 = vdwg.mxu0
    %v858 = vsel %vm339, %v310, 0
    %v860 = vsel %vm339, %v324, 0
    %862 = vmatprep.subr.mxu0 0.0
    %863 = vmatpush1.xpose.msra.mxu0 %v860
    %864 = vmatprep.subr.mxu0 0.0
    %865 = vmatpush1.xpose.msra.mxu0 0.0
    %866 = vmatprep.subr.mxu0 0.0
    %867 = vmatpush1.xpose.msra.mxu0 0.0
    %868 = vmatprep.subr.mxu0 0.0
    %869 = vmatpush1.xpose.msra.mxu0 0.0
    %870 = vmatprep.subr.mxu0 0.0
    %871 = vmatpush1.xpose.msra.mxu0 0.0
    %872 = vmatprep.subr.mxu0 0.0
    %873 = vmatpush1.xpose.msra.mxu0 0.0
    %874 = vmatprep.subr.mxu0 0.0
    %875 = vmatpush1.xpose.msra.mxu0 0.0
    %876 = vmatprep.subr.mxu0 0.0
    %877 = vmatpush1.xpose.msra.mxu0 0.0
    %878 = vmatprep.subr.mxu0 0.0
    %879 = vmatpush1.xpose.msra.mxu0 0.0
    %880 = vmatprep.subr.mxu0 0.0
    %881 = vmatpush1.xpose.msra.mxu0 0.0
    %882 = vmatprep.subr.mxu0 0.0
    %883 = vmatpush1.xpose.msra.mxu0 0.0
    %884 = vmatprep.subr.mxu0 0.0
    %885 = vmatpush1.xpose.msra.mxu0 0.0
    %886 = vmatprep.subr.mxu0 0.0
    %887 = vmatpush1.xpose.msra.mxu0 0.0
    %888 = vmatprep.subr.mxu0 0.0
    %889 = vmatpush1.xpose.msra.mxu0 0.0
    %890 = vmatprep.subr.mxu0 0.0
    %891 = vmatpush1.xpose.msra.mxu0 0.0
    %892 = vmatprep.subr.mxu0 0.0
    %893 = vmatpush1.xpose.msra.mxu0 0.0
    %894 = vmatprep.subr.mxu0 0.0
    %895 = vmatpush1.xpose.msra.mxu0 0.0
    %896 = vmatprep.subr.mxu0 0.0
    %897 = vmatpush1.xpose.msra.mxu0 0.0
    %898 = vmatprep.subr.mxu0 0.0
    %899 = vmatpush1.xpose.msra.mxu0 0.0
    %900 = vmatprep.subr.mxu0 0.0
    %901 = vmatpush1.xpose.msra.mxu0 0.0
    %902 = vmatprep.subr.mxu0 0.0
    %903 = vmatpush1.xpose.msra.mxu0 0.0
    %904 = vmatprep.subr.mxu0 0.0
    %905 = vmatpush1.xpose.msra.mxu0 0.0
    %906 = vmatprep.subr.mxu0 0.0
    %907 = vmatpush1.xpose.msra.mxu0 0.0
    %908 = vmatprep.subr.mxu0 0.0
    %909 = vmatpush1.xpose.msra.mxu0 0.0
    %910 = vmatprep.subr.mxu0 0.0
    %911 = vmatpush1.xpose.msra.mxu0 0.0
    %912 = vmatprep.subr.mxu0 0.0
    %913 = vmatpush1.xpose.msra.mxu0 0.0
    %914 = vmatprep.subr.mxu0 0.0
    %915 = vmatpush1.xpose.msra.mxu0 0.0
    %916 = vmatprep.subr.mxu0 0.0
    %917 = vmatpush1.xpose.msra.mxu0 0.0
    %918 = vmatprep.subr.mxu0 0.0
    %919 = vmatpush1.xpose.msra.mxu0 0.0
    %920 = vmatprep.subr.mxu0 0.0
    %921 = vmatpush1.xpose.msra.mxu0 0.0
    %922 = vmatprep.subr.mxu0 0.0
    %923 = vmatpush1.xpose.msra.mxu0 0.0
    %924 = vmatprep.subr.mxu0 0.0
    %925 = vmatpush1.xpose.msra.mxu0 0.0
    %926 = vmatprep.mubr.f32.mxu0 0.0
    %927 = vmatmul.mubr.f32.gmra.mrb[0].mxu0 %v858
    %v928 = vpop.f32.mrb[0].mxu0
    %v929 = vadd.f32 0.0, %v928
    %v930 = vpop.f32.mrb[0].mxu0
    %931 = vdwg.mxu0
    %v932 = vld [vmem:[#allocation7] sm:$0x1]
    %v933 = vld [vmem:[#allocation7 + $0x1] sm:$0x1]
    %v936 = vlaneseq
    %v937 = vshrl.u32 %v936, 7
    %v938 = vsub.s32 0, %v937
    %v939 = vrot.slane %v932, %v938
    %v940 = vlaneseq
    %v941 = vshrl.u32 %v940, 7
    %v942 = vsub.s32 0, %v941
    %v943 = vrot.slane %v933, %v942
    %v946 = vadd.f32 %v411, %v939
    %v947 = vadd.f32 %v485, %v939
    %v948 = vadd.f32 %v559, %v939
    %v949 = vadd.f32 %v633, %v939
    %v950 = vadd.f32 %v707, %v943
    %v951 = vadd.f32 %v781, %v943
    %v952 = vadd.f32 %v855, %v943
    %v953 = vadd.f32 %v929, %v943
    %v954 = vsel %vm339, %v946, -inf
    %955 = vmax.xlane.f32.xlu0 %v954
    %v956 = vpop.xlane.xlu0 %955
    %v957 = vsel %vm339, %v947, -inf
    %958 = vmax.xlane.f32.xlu0 %v957
    %v959 = vpop.xlane.xlu0 %958
    %v960 = vsel %vm339, %v948, -inf
    %961 = vmax.xlane.f32.xlu0 %v960
    %v962 = vpop.xlane.xlu0 %961
    %v963 = vsel %vm339, %v949, -inf
    %964 = vmax.xlane.f32.xlu0 %v963
    %v965 = vpop.xlane.xlu0 %964
    %v966 = vsel %vm339, %v950, -inf
    %967 = vmax.xlane.f32.xlu0 %v966
    %v968 = vpop.xlane.xlu0 %967
    %v969 = vsel %vm339, %v951, -inf
    %970 = vmax.xlane.f32.xlu0 %v969
    %v971 = vpop.xlane.xlu0 %970
    %v972 = vsel %vm339, %v952, -inf
    %973 = vmax.xlane.f32.xlu0 %v972
    %v974 = vpop.xlane.xlu0 %973
    %v975 = vsel %vm339, %v953, -inf
    %976 = vmax.xlane.f32.xlu0 %v975
    %v977 = vpop.xlane.xlu0 %976
    %v978 = vsub.f32 %v946, %v956
    %v979 = vsub.f32 %v947, %v959
    %v980 = vsub.f32 %v948, %v962
    %v981 = vsub.f32 %v949, %v965
    %v982 = vsub.f32 %v950, %v968
    %v983 = vsub.f32 %v951, %v971
    %v984 = vsub.f32 %v952, %v974
    %v985 = vsub.f32 %v953, %v977
    %v986 = vmul.f32 %v978, 1.442695
    %v987 = vpow.pop %v986
    %v988 = vmul.f32 %v979, 1.442695
    %v989 = vpow.pop %v988
    %v990 = vmul.f32 %v980, 1.442695
    %v991 = vpow.pop %v990
    %v992 = vmul.f32 %v981, 1.442695
    %v993 = vpow.pop %v992
    %v994 = vmul.f32 %v982, 1.442695
    %v995 = vpow.pop %v994
    %v996 = vmul.f32 %v983, 1.442695
    %v997 = vpow.pop %v996
    %v998 = vmul.f32 %v984, 1.442695
    %v999 = vpow.pop %v998
    %v1000 = vmul.f32 %v985, 1.442695
    %v1001 = vpow.pop %v1000
    %v1002 = vsel %vm339, %v987, 0.0
    %1003 = vadd.xlane.f32.xlu0 %v1002
    %v1004 = vpop.xlane.xlu0 %1003
    %v1005 = vsel %vm339, %v989, 0.0
    %1006 = vadd.xlane.f32.xlu0 %v1005
    %v1007 = vpop.xlane.xlu0 %1006
    %v1008 = vsel %vm339, %v991, 0.0
    %1009 = vadd.xlane.f32.xlu0 %v1008
    %v1010 = vpop.xlane.xlu0 %1009
    %v1011 = vsel %vm339, %v993, 0.0
    %1012 = vadd.xlane.f32.xlu0 %v1011
    %v1013 = vpop.xlane.xlu0 %1012
    %v1014 = vsel %vm339, %v995, 0.0
    %1015 = vadd.xlane.f32.xlu0 %v1014
    %v1016 = vpop.xlane.xlu0 %1015
    %v1017 = vsel %vm339, %v997, 0.0
    %1018 = vadd.xlane.f32.xlu0 %v1017
    %v1019 = vpop.xlane.xlu0 %1018
    %v1020 = vsel %vm339, %v999, 0.0
    %1021 = vadd.xlane.f32.xlu0 %v1020
    %v1022 = vpop.xlane.xlu0 %1021
    %v1023 = vsel %vm339, %v1001, 0.0
    %1024 = vadd.xlane.f32.xlu0 %v1023
    %v1025 = vpop.xlane.xlu0 %1024
    %v1026 = vrcp.pop %v1004
    %v1027 = vmul.f32 1.0, %v1026
    %v1028 = vrcp.pop %v1007
    %v1029 = vmul.f32 1.0, %v1028
    %v1030 = vrcp.pop %v1010
    %v1031 = vmul.f32 1.0, %v1030
    %v1032 = vrcp.pop %v1013
    %v1033 = vmul.f32 1.0, %v1032
    %v1034 = vrcp.pop %v1016
    %v1035 = vmul.f32 1.0, %v1034
    %v1036 = vrcp.pop %v1019
    %v1037 = vmul.f32 1.0, %v1036
    %v1038 = vrcp.pop %v1022
    %v1039 = vmul.f32 1.0, %v1038
    %v1040 = vrcp.pop %v1025
    %v1041 = vmul.f32 1.0, %v1040
    %v1042 = vmul.f32 %v987, %v1027
    %v1043 = vmul.f32 %v989, %v1029
    %v1044 = vmul.f32 %v991, %v1031
    %v1045 = vmul.f32 %v993, %v1033
    %v1046 = vmul.f32 %v995, %v1035
    %v1047 = vmul.f32 %v997, %v1037
    %v1048 = vmul.f32 %v999, %v1039
    %v1049 = vmul.f32 %v1001, %v1041
    %v1050 = vld [vmem:[%s3] sm:$0xff]
    %v1051 = vld [vmem:[%s3 + $0x8] sm:$0xff]
    %1053 = vset.pattern.permute.xlu0 0
    %1054 = vperm.xlu0 %1053, %v1050
    %v1055 = vpop.permute.xlu0 %1054
    %1058 = vset.pattern.permute.xlu0 0
    %1059 = vperm.xlu0 %1058, %v1051
    %v1060 = vpop.permute.xlu0 %1059
    %v1062 = vmul.f32 %v1042, %v1055
    %v1063 = vmul.f32 %v1043, %v1055
    %v1064 = vmul.f32 %v1044, %v1055
    %v1065 = vmul.f32 %v1045, %v1055
    %v1066 = vmul.f32 %v1046, %v1060
    %v1067 = vmul.f32 %v1047, %v1060
    %v1068 = vmul.f32 %v1048, %v1060
    %v1069 = vmul.f32 %v1049, %v1060
    %1070 = vst.msk [vmem:[#allocation12] sm:$0xff] %vm339, %v1062
    %1071 = vst.msk [vmem:[#allocation12 + $0x8] sm:$0xff] %vm339, %v1063
    %1072 = vst.msk [vmem:[#allocation12 + $0x10] sm:$0xff] %vm339, %v1064
    %1073 = vst.msk [vmem:[#allocation12 + $0x18] sm:$0xff] %vm339, %v1065
    %1074 = vst.msk [vmem:[#allocation12 + $0x20] sm:$0xff] %vm339, %v1066
    %1075 = vst.msk [vmem:[#allocation12 + $0x28] sm:$0xff] %vm339, %v1067
    %1076 = vst.msk [vmem:[#allocation12 + $0x30] sm:$0xff] %vm339, %v1068
    %1077 = vst.msk [vmem:[#allocation12 + $0x38] sm:$0xff] %vm339, %v1069
    %1078 = vrot.lane.b32.xlu0 %v295, 96
    %v1079 = vpop.permute.xlu0 %1078
    %v1082 = vsel %vm339, %v1062, 0
    %1084 = vmatprep.subr.mxu0 0.0
    %1085 = vmatpush1.msra.mxu0 %v1079
    %1086 = vmatprep.subr.mxu0 0.0
    %1087 = vmatpush1.msra.mxu0 0.0
    %1088 = vmatprep.subr.mxu0 0.0
    %1089 = vmatpush1.msra.mxu0 0.0
    %1090 = vmatprep.subr.mxu0 0.0
    %1091 = vmatpush1.msra.mxu0 0.0
    %1092 = vmatprep.subr.mxu0 0.0
    %1093 = vmatpush1.msra.mxu0 0.0
    %1094 = vmatprep.subr.mxu0 0.0
    %1095 = vmatpush1.msra.mxu0 0.0
    %1096 = vmatprep.subr.mxu0 0.0
    %1097 = vmatpush1.msra.mxu0 0.0
    %1098 = vmatprep.subr.mxu0 0.0
    %1099 = vmatpush1.msra.mxu0 0.0
    %1100 = vmatprep.subr.mxu0 0.0
    %1101 = vmatpush1.msra.mxu0 0.0
    %1102 = vmatprep.subr.mxu0 0.0
    %1103 = vmatpush1.msra.mxu0 0.0
    %1104 = vmatprep.subr.mxu0 0.0
    %1105 = vmatpush1.msra.mxu0 0.0
    %1106 = vmatprep.subr.mxu0 0.0
    %1107 = vmatpush1.msra.mxu0 0.0
    %1108 = vmatprep.subr.mxu0 0.0
    %1109 = vmatpush1.msra.mxu0 0.0
    %1110 = vmatprep.subr.mxu0 0.0
    %1111 = vmatpush1.msra.mxu0 0.0
    %1112 = vmatprep.subr.mxu0 0.0
    %1113 = vmatpush1.msra.mxu0 0.0
    %1114 = vmatprep.subr.mxu0 0.0
    %1115 = vmatpush1.msra.mxu0 0.0
    %1116 = vmatprep.subr.mxu0 0.0
    %1117 = vmatpush1.msra.mxu0 0.0
    %1118 = vmatprep.subr.mxu0 0.0
    %1119 = vmatpush1.msra.mxu0 0.0
    %1120 = vmatprep.subr.mxu0 0.0
    %1121 = vmatpush1.msra.mxu0 0.0
    %1122 = vmatprep.subr.mxu0 0.0
    %1123 = vmatpush1.msra.mxu0 0.0
    %1124 = vmatprep.subr.mxu0 0.0
    %1125 = vmatpush1.msra.mxu0 0.0
    %1126 = vmatprep.subr.mxu0 0.0
    %1127 = vmatpush1.msra.mxu0 0.0
    %1128 = vmatprep.subr.mxu0 0.0
    %1129 = vmatpush1.msra.mxu0 0.0
    %1130 = vmatprep.subr.mxu0 0.0
    %1131 = vmatpush1.msra.mxu0 0.0
    %1132 = vmatprep.subr.mxu0 0.0
    %1133 = vmatpush1.msra.mxu0 0.0
    %1134 = vmatprep.subr.mxu0 0.0
    %1135 = vmatpush1.msra.mxu0 0.0
    %1136 = vmatprep.subr.mxu0 0.0
    %1137 = vmatpush1.msra.mxu0 0.0
    %1138 = vmatprep.subr.mxu0 0.0
    %1139 = vmatpush1.msra.mxu0 0.0
    %1140 = vmatprep.subr.mxu0 0.0
    %1141 = vmatpush1.msra.mxu0 0.0
    %1142 = vmatprep.subr.mxu0 0.0
    %1143 = vmatpush1.msra.mxu0 0.0
    %1144 = vmatprep.subr.mxu0 0.0
    %1145 = vmatpush1.msra.mxu0 0.0
    %1146 = vmatprep.subr.mxu0 0.0
    %1147 = vmatpush1.msra.mxu0 0.0
    %1148 = vmatprep.mubr.f32.mxu0 0.0
    %1149 = vmatmul.mubr.f32.gmra.mrb[0].mxu0 %v1082
    %v1150 = vpop.f32.mrb[0].mxu0
    %v1151 = vadd.f32 0.0, %v1150
    %v1152 = vpop.f32.mrb[0].mxu0
    %1153 = vdwg.mxu0
    %1154 = vrot.lane.b32.xlu0 %v328, 96
    %v1155 = vpop.permute.xlu0 %1154
    %v1158 = vsel %vm339, %v1063, 0
    %1160 = vmatprep.subr.mxu0 0.0
    %1161 = vmatpush1.msra.mxu0 %v1155
    %1162 = vmatprep.subr.mxu0 0.0
    %1163 = vmatpush1.msra.mxu0 0.0
    %1164 = vmatprep.subr.mxu0 0.0
    %1165 = vmatpush1.msra.mxu0 0.0
    %1166 = vmatprep.subr.mxu0 0.0
    %1167 = vmatpush1.msra.mxu0 0.0
    %1168 = vmatprep.subr.mxu0 0.0
    %1169 = vmatpush1.msra.mxu0 0.0
    %1170 = vmatprep.subr.mxu0 0.0
    %1171 = vmatpush1.msra.mxu0 0.0
    %1172 = vmatprep.subr.mxu0 0.0
    %1173 = vmatpush1.msra.mxu0 0.0
    %1174 = vmatprep.subr.mxu0 0.0
    %1175 = vmatpush1.msra.mxu0 0.0
    %1176 = vmatprep.subr.mxu0 0.0
    %1177 = vmatpush1.msra.mxu0 0.0
    %1178 = vmatprep.subr.mxu0 0.0
    %1179 = vmatpush1.msra.mxu0 0.0
    %1180 = vmatprep.subr.mxu0 0.0
    %1181 = vmatpush1.msra.mxu0 0.0
    %1182 = vmatprep.subr.mxu0 0.0
    %1183 = vmatpush1.msra.mxu0 0.0
    %1184 = vmatprep.subr.mxu0 0.0
    %1185 = vmatpush1.msra.mxu0 0.0
    %1186 = vmatprep.subr.mxu0 0.0
    %1187 = vmatpush1.msra.mxu0 0.0
    %1188 = vmatprep.subr.mxu0 0.0
    %1189 = vmatpush1.msra.mxu0 0.0
    %1190 = vmatprep.subr.mxu0 0.0
    %1191 = vmatpush1.msra.mxu0 0.0
    %1192 = vmatprep.subr.mxu0 0.0
    %1193 = vmatpush1.msra.mxu0 0.0
    %1194 = vmatprep.subr.mxu0 0.0
    %1195 = vmatpush1.msra.mxu0 0.0
    %1196 = vmatprep.subr.mxu0 0.0
    %1197 = vmatpush1.msra.mxu0 0.0
    %1198 = vmatprep.subr.mxu0 0.0
    %1199 = vmatpush1.msra.mxu0 0.0
    %1200 = vmatprep.subr.mxu0 0.0
    %1201 = vmatpush1.msra.mxu0 0.0
    %1202 = vmatprep.subr.mxu0 0.0
    %1203 = vmatpush1.msra.mxu0 0.0
    %1204 = vmatprep.subr.mxu0 0.0
    %1205 = vmatpush1.msra.mxu0 0.0
    %1206 = vmatprep.subr.mxu0 0.0
    %1207 = vmatpush1.msra.mxu0 0.0
    %1208 = vmatprep.subr.mxu0 0.0
    %1209 = vmatpush1.msra.mxu0 0.0
    %1210 = vmatprep.subr.mxu0 0.0
    %1211 = vmatpush1.msra.mxu0 0.0
    %1212 = vmatprep.subr.mxu0 0.0
    %1213 = vmatpush1.msra.mxu0 0.0
    %1214 = vmatprep.subr.mxu0 0.0
    %1215 = vmatpush1.msra.mxu0 0.0
    %1216 = vmatprep.subr.mxu0 0.0
    %1217 = vmatpush1.msra.mxu0 0.0
    %1218 = vmatprep.subr.mxu0 0.0
    %1219 = vmatpush1.msra.mxu0 0.0
    %1220 = vmatprep.subr.mxu0 0.0
    %1221 = vmatpush1.msra.mxu0 0.0
    %1222 = vmatprep.subr.mxu0 0.0
    %1223 = vmatpush1.msra.mxu0 0.0
    %1224 = vmatprep.mubr.f32.mxu0 0.0
    %1225 = vmatmul.mubr.f32.gmra.mrb[0].mxu0 %v1158
    %v1226 = vpop.f32.mrb[0].mxu0
    %v1227 = vadd.f32 0.0, %v1226
    %v1228 = vpop.f32.mrb[0].mxu0
    %1229 = vdwg.mxu0
    %1230 = vrot.lane.b32.xlu0 %v332, 96
    %v1231 = vpop.permute.xlu0 %1230
    %v1234 = vsel %vm339, %v1064, 0
    %1236 = vmatprep.subr.mxu0 0.0
    %1237 = vmatpush1.msra.mxu0 %v1231
    %1238 = vmatprep.subr.mxu0 0.0
    %1239 = vmatpush1.msra.mxu0 0.0
    %1240 = vmatprep.subr.mxu0 0.0
    %1241 = vmatpush1.msra.mxu0 0.0
    %1242 = vmatprep.subr.mxu0 0.0
    %1243 = vmatpush1.msra.mxu0 0.0
    %1244 = vmatprep.subr.mxu0 0.0
    %1245 = vmatpush1.msra.mxu0 0.0
    %1246 = vmatprep.subr.mxu0 0.0
    %1247 = vmatpush1.msra.mxu0 0.0
    %1248 = vmatprep.subr.mxu0 0.0
    %1249 = vmatpush1.msra.mxu0 0.0
    %1250 = vmatprep.subr.mxu0 0.0
    %1251 = vmatpush1.msra.mxu0 0.0
    %1252 = vmatprep.subr.mxu0 0.0
    %1253 = vmatpush1.msra.mxu0 0.0
    %1254 = vmatprep.subr.mxu0 0.0
    %1255 = vmatpush1.msra.mxu0 0.0
    %1256 = vmatprep.subr.mxu0 0.0
    %1257 = vmatpush1.msra.mxu0 0.0
    %1258 = vmatprep.subr.mxu0 0.0
    %1259 = vmatpush1.msra.mxu0 0.0
    %1260 = vmatprep.subr.mxu0 0.0
    %1261 = vmatpush1.msra.mxu0 0.0
    %1262 = vmatprep.subr.mxu0 0.0
    %1263 = vmatpush1.msra.mxu0 0.0
    %1264 = vmatprep.subr.mxu0 0.0
    %1265 = vmatpush1.msra.mxu0 0.0
    %1266 = vmatprep.subr.mxu0 0.0
    %1267 = vmatpush1.msra.mxu0 0.0
    %1268 = vmatprep.subr.mxu0 0.0
    %1269 = vmatpush1.msra.mxu0 0.0
    %1270 = vmatprep.subr.mxu0 0.0
    %1271 = vmatpush1.msra.mxu0 0.0
    %1272 = vmatprep.subr.mxu0 0.0
    %1273 = vmatpush1.msra.mxu0 0.0
    %1274 = vmatprep.subr.mxu0 0.0
    %1275 = vmatpush1.msra.mxu0 0.0
    %1276 = vmatprep.subr.mxu0 0.0
    %1277 = vmatpush1.msra.mxu0 0.0
    %1278 = vmatprep.subr.mxu0 0.0
    %1279 = vmatpush1.msra.mxu0 0.0
    %1280 = vmatprep.subr.mxu0 0.0
    %1281 = vmatpush1.msra.mxu0 0.0
    %1282 = vmatprep.subr.mxu0 0.0
    %1283 = vmatpush1.msra.mxu0 0.0
    %1284 = vmatprep.subr.mxu0 0.0
    %1285 = vmatpush1.msra.mxu0 0.0
    %1286 = vmatprep.subr.mxu0 0.0
    %1287 = vmatpush1.msra.mxu0 0.0
    %1288 = vmatprep.subr.mxu0 0.0
    %1289 = vmatpush1.msra.mxu0 0.0
    %1290 = vmatprep.subr.mxu0 0.0
    %1291 = vmatpush1.msra.mxu0 0.0
    %1292 = vmatprep.subr.mxu0 0.0
    %1293 = vmatpush1.msra.mxu0 0.0
    %1294 = vmatprep.subr.mxu0 0.0
    %1295 = vmatpush1.msra.mxu0 0.0
    %1296 = vmatprep.subr.mxu0 0.0
    %1297 = vmatpush1.msra.mxu0 0.0
    %1298 = vmatprep.subr.mxu0 0.0
    %1299 = vmatpush1.msra.mxu0 0.0
    %1300 = vmatprep.mubr.f32.mxu0 0.0
    %1301 = vmatmul.mubr.f32.gmra.mrb[0].mxu0 %v1234
    %v1302 = vpop.f32.mrb[0].mxu0
    %v1303 = vadd.f32 0.0, %v1302
    %v1304 = vpop.f32.mrb[0].mxu0
    %1305 = vdwg.mxu0
    %1306 = vrot.lane.b32.xlu0 %v336, 96
    %v1307 = vpop.permute.xlu0 %1306
    %v1310 = vsel %vm339, %v1065, 0
    %1312 = vmatprep.subr.mxu0 0.0
    %1313 = vmatpush1.msra.mxu0 %v1307
    %1314 = vmatprep.subr.mxu0 0.0
    %1315 = vmatpush1.msra.mxu0 0.0
    %1316 = vmatprep.subr.mxu0 0.0
    %1317 = vmatpush1.msra.mxu0 0.0
    %1318 = vmatprep.subr.mxu0 0.0
    %1319 = vmatpush1.msra.mxu0 0.0
    %1320 = vmatprep.subr.mxu0 0.0
    %1321 = vmatpush1.msra.mxu0 0.0
    %1322 = vmatprep.subr.mxu0 0.0
    %1323 = vmatpush1.msra.mxu0 0.0
    %1324 = vmatprep.subr.mxu0 0.0
    %1325 = vmatpush1.msra.mxu0 0.0
    %1326 = vmatprep.subr.mxu0 0.0
    %1327 = vmatpush1.msra.mxu0 0.0
    %1328 = vmatprep.subr.mxu0 0.0
    %1329 = vmatpush1.msra.mxu0 0.0
    %1330 = vmatprep.subr.mxu0 0.0
    %1331 = vmatpush1.msra.mxu0 0.0
    %1332 = vmatprep.subr.mxu0 0.0
    %1333 = vmatpush1.msra.mxu0 0.0
    %1334 = vmatprep.subr.mxu0 0.0
    %1335 = vmatpush1.msra.mxu0 0.0
    %1336 = vmatprep.subr.mxu0 0.0
    %1337 = vmatpush1.msra.mxu0 0.0
    %1338 = vmatprep.subr.mxu0 0.0
    %1339 = vmatpush1.msra.mxu0 0.0
    %1340 = vmatprep.subr.mxu0 0.0
    %1341 = vmatpush1.msra.mxu0 0.0
    %1342 = vmatprep.subr.mxu0 0.0
    %1343 = vmatpush1.msra.mxu0 0.0
    %1344 = vmatprep.subr.mxu0 0.0
    %1345 = vmatpush1.msra.mxu0 0.0
    %1346 = vmatprep.subr.mxu0 0.0
    %1347 = vmatpush1.msra.mxu0 0.0
    %1348 = vmatprep.subr.mxu0 0.0
    %1349 = vmatpush1.msra.mxu0 0.0
    %1350 = vmatprep.subr.mxu0 0.0
    %1351 = vmatpush1.msra.mxu0 0.0
    %1352 = vmatprep.subr.mxu0 0.0
    %1353 = vmatpush1.msra.mxu0 0.0
    %1354 = vmatprep.subr.mxu0 0.0
    %1355 = vmatpush1.msra.mxu0 0.0
    %1356 = vmatprep.subr.mxu0 0.0
    %1357 = vmatpush1.msra.mxu0 0.0
    %1358 = vmatprep.subr.mxu0 0.0
    %1359 = vmatpush1.msra.mxu0 0.0
    %1360 = vmatprep.subr.mxu0 0.0
    %1361 = vmatpush1.msra.mxu0 0.0
    %1362 = vmatprep.subr.mxu0 0.0
    %1363 = vmatpush1.msra.mxu0 0.0
    %1364 = vmatprep.subr.mxu0 0.0
    %1365 = vmatpush1.msra.mxu0 0.0
    %1366 = vmatprep.subr.mxu0 0.0
    %1367 = vmatpush1.msra.mxu0 0.0
    %1368 = vmatprep.subr.mxu0 0.0
    %1369 = vmatpush1.msra.mxu0 0.0
    %1370 = vmatprep.subr.mxu0 0.0
    %1371 = vmatpush1.msra.mxu0 0.0
    %1372 = vmatprep.subr.mxu0 0.0
    %1373 = vmatpush1.msra.mxu0 0.0
    %1374 = vmatprep.subr.mxu0 0.0
    %1375 = vmatpush1.msra.mxu0 0.0
    %1376 = vmatprep.mubr.f32.mxu0 0.0
    %1377 = vmatmul.mubr.f32.gmra.mrb[0].mxu0 %v1310
    %v1378 = vpop.f32.mrb[0].mxu0
    %v1379 = vadd.f32 0.0, %v1378
    %v1380 = vpop.f32.mrb[0].mxu0
    %1381 = vdwg.mxu0
    %1382 = vrot.lane.b32.xlu0 %v296, 96
    %v1383 = vpop.permute.xlu0 %1382
    %v1386 = vsel %vm339, %v1066, 0
    %1388 = vmatprep.subr.mxu0 0.0
    %1389 = vmatpush1.msra.mxu0 %v1383
    %1390 = vmatprep.subr.mxu0 0.0
    %1391 = vmatpush1.msra.mxu0 0.0
    %1392 = vmatprep.subr.mxu0 0.0
    %1393 = vmatpush1.msra.mxu0 0.0
    %1394 = vmatprep.subr.mxu0 0.0
    %1395 = vmatpush1.msra.mxu0 0.0
    %1396 = vmatprep.subr.mxu0 0.0
    %1397 = vmatpush1.msra.mxu0 0.0
    %1398 = vmatprep.subr.mxu0 0.0
    %1399 = vmatpush1.msra.mxu0 0.0
    %1400 = vmatprep.subr.mxu0 0.0
    %1401 = vmatpush1.msra.mxu0 0.0
    %1402 = vmatprep.subr.mxu0 0.0
    %1403 = vmatpush1.msra.mxu0 0.0
    %1404 = vmatprep.subr.mxu0 0.0
    %1405 = vmatpush1.msra.mxu0 0.0
    %1406 = vmatprep.subr.mxu0 0.0
    %1407 = vmatpush1.msra.mxu0 0.0
    %1408 = vmatprep.subr.mxu0 0.0
    %1409 = vmatpush1.msra.mxu0 0.0
    %1410 = vmatprep.subr.mxu0 0.0
    %1411 = vmatpush1.msra.mxu0 0.0
    %1412 = vmatprep.subr.mxu0 0.0
    %1413 = vmatpush1.msra.mxu0 0.0
    %1414 = vmatprep.subr.mxu0 0.0
    %1415 = vmatpush1.msra.mxu0 0.0
    %1416 = vmatprep.subr.mxu0 0.0
    %1417 = vmatpush1.msra.mxu0 0.0
    %1418 = vmatprep.subr.mxu0 0.0
    %1419 = vmatpush1.msra.mxu0 0.0
    %1420 = vmatprep.subr.mxu0 0.0
    %1421 = vmatpush1.msra.mxu0 0.0
    %1422 = vmatprep.subr.mxu0 0.0
    %1423 = vmatpush1.msra.mxu0 0.0
    %1424 = vmatprep.subr.mxu0 0.0
    %1425 = vmatpush1.msra.mxu0 0.0
    %1426 = vmatprep.subr.mxu0 0.0
    %1427 = vmatpush1.msra.mxu0 0.0
    %1428 = vmatprep.subr.mxu0 0.0
    %1429 = vmatpush1.msra.mxu0 0.0
    %1430 = vmatprep.subr.mxu0 0.0
    %1431 = vmatpush1.msra.mxu0 0.0
    %1432 = vmatprep.subr.mxu0 0.0
    %1433 = vmatpush1.msra.mxu0 0.0
    %1434 = vmatprep.subr.mxu0 0.0
    %1435 = vmatpush1.msra.mxu0 0.0
    %1436 = vmatprep.subr.mxu0 0.0
    %1437 = vmatpush1.msra.mxu0 0.0
    %1438 = vmatprep.subr.mxu0 0.0
    %1439 = vmatpush1.msra.mxu0 0.0
    %1440 = vmatprep.subr.mxu0 0.0
    %1441 = vmatpush1.msra.mxu0 0.0
    %1442 = vmatprep.subr.mxu0 0.0
    %1443 = vmatpush1.msra.mxu0 0.0
    %1444 = vmatprep.subr.mxu0 0.0
    %1445 = vmatpush1.msra.mxu0 0.0
    %1446 = vmatprep.subr.mxu0 0.0
    %1447 = vmatpush1.msra.mxu0 0.0
    %1448 = vmatprep.subr.mxu0 0.0
    %1449 = vmatpush1.msra.mxu0 0.0
    %1450 = vmatprep.subr.mxu0 0.0
    %1451 = vmatpush1.msra.mxu0 0.0
    %1452 = vmatprep.mubr.f32.mxu0 0.0
    %1453 = vmatmul.mubr.f32.gmra.mrb[0].mxu0 %v1386
    %v1454 = vpop.f32.mrb[0].mxu0
    %v1455 = vadd.f32 0.0, %v1454
    %v1456 = vpop.f32.mrb[0].mxu0
    %1457 = vdwg.mxu0
    %1458 = vrot.lane.b32.xlu0 %v330, 96
    %v1459 = vpop.permute.xlu0 %1458
    %v1462 = vsel %vm339, %v1067, 0
    %1464 = vmatprep.subr.mxu0 0.0
    %1465 = vmatpush1.msra.mxu0 %v1459
    %1466 = vmatprep.subr.mxu0 0.0
    %1467 = vmatpush1.msra.mxu0 0.0
    %1468 = vmatprep.subr.mxu0 0.0
    %1469 = vmatpush1.msra.mxu0 0.0
    %1470 = vmatprep.subr.mxu0 0.0
    %1471 = vmatpush1.msra.mxu0 0.0
    %1472 = vmatprep.subr.mxu0 0.0
    %1473 = vmatpush1.msra.mxu0 0.0
    %1474 = vmatprep.subr.mxu0 0.0
    %1475 = vmatpush1.msra.mxu0 0.0
    %1476 = vmatprep.subr.mxu0 0.0
    %1477 = vmatpush1.msra.mxu0 0.0
    %1478 = vmatprep.subr.mxu0 0.0
    %1479 = vmatpush1.msra.mxu0 0.0
    %1480 = vmatprep.subr.mxu0 0.0
    %1481 = vmatpush1.msra.mxu0 0.0
    %1482 = vmatprep.subr.mxu0 0.0
    %1483 = vmatpush1.msra.mxu0 0.0
    %1484 = vmatprep.subr.mxu0 0.0
    %1485 = vmatpush1.msra.mxu0 0.0
    %1486 = vmatprep.subr.mxu0 0.0
    %1487 = vmatpush1.msra.mxu0 0.0
    %1488 = vmatprep.subr.mxu0 0.0
    %1489 = vmatpush1.msra.mxu0 0.0
    %1490 = vmatprep.subr.mxu0 0.0
    %1491 = vmatpush1.msra.mxu0 0.0
    %1492 = vmatprep.subr.mxu0 0.0
    %1493 = vmatpush1.msra.mxu0 0.0
    %1494 = vmatprep.subr.mxu0 0.0
    %1495 = vmatpush1.msra.mxu0 0.0
    %1496 = vmatprep.subr.mxu0 0.0
    %1497 = vmatpush1.msra.mxu0 0.0
    %1498 = vmatprep.subr.mxu0 0.0
    %1499 = vmatpush1.msra.mxu0 0.0
    %1500 = vmatprep.subr.mxu0 0.0
    %1501 = vmatpush1.msra.mxu0 0.0
    %1502 = vmatprep.subr.mxu0 0.0
    %1503 = vmatpush1.msra.mxu0 0.0
    %1504 = vmatprep.subr.mxu0 0.0
    %1505 = vmatpush1.msra.mxu0 0.0
    %1506 = vmatprep.subr.mxu0 0.0
    %1507 = vmatpush1.msra.mxu0 0.0
    %1508 = vmatprep.subr.mxu0 0.0
    %1509 = vmatpush1.msra.mxu0 0.0
    %1510 = vmatprep.subr.mxu0 0.0
    %1511 = vmatpush1.msra.mxu0 0.0
    %1512 = vmatprep.subr.mxu0 0.0
    %1513 = vmatpush1.msra.mxu0 0.0
    %1514 = vmatprep.subr.mxu0 0.0
    %1515 = vmatpush1.msra.mxu0 0.0
    %1516 = vmatprep.subr.mxu0 0.0
    %1517 = vmatpush1.msra.mxu0 0.0
    %1518 = vmatprep.subr.mxu0 0.0
    %1519 = vmatpush1.msra.mxu0 0.0
    %1520 = vmatprep.subr.mxu0 0.0
    %1521 = vmatpush1.msra.mxu0 0.0
    %1522 = vmatprep.subr.mxu0 0.0
    %1523 = vmatpush1.msra.mxu0 0.0
    %1524 = vmatprep.subr.mxu0 0.0
    %1525 = vmatpush1.msra.mxu0 0.0
    %1526 = vmatprep.subr.mxu0 0.0
    %1527 = vmatpush1.msra.mxu0 0.0
    %1528 = vmatprep.mubr.f32.mxu0 0.0
    %1529 = vmatmul.mubr.f32.gmra.mrb[0].mxu0 %v1462
    %v1530 = vpop.f32.mrb[0].mxu0
    %v1531 = vadd.f32 0.0, %v1530
    %v1532 = vpop.f32.mrb[0].mxu0
    %1533 = vdwg.mxu0
    %1534 = vrot.lane.b32.xlu0 %v334, 96
    %v1535 = vpop.permute.xlu0 %1534
    %v1538 = vsel %vm339, %v1068, 0
    %1540 = vmatprep.subr.mxu0 0.0
    %1541 = vmatpush1.msra.mxu0 %v1535
    %1542 = vmatprep.subr.mxu0 0.0
    %1543 = vmatpush1.msra.mxu0 0.0
    %1544 = vmatprep.subr.mxu0 0.0
    %1545 = vmatpush1.msra.mxu0 0.0
    %1546 = vmatprep.subr.mxu0 0.0
    %1547 = vmatpush1.msra.mxu0 0.0
    %1548 = vmatprep.subr.mxu0 0.0
    %1549 = vmatpush1.msra.mxu0 0.0
    %1550 = vmatprep.subr.mxu0 0.0
    %1551 = vmatpush1.msra.mxu0 0.0
    %1552 = vmatprep.subr.mxu0 0.0
    %1553 = vmatpush1.msra.mxu0 0.0
    %1554 = vmatprep.subr.mxu0 0.0
    %1555 = vmatpush1.msra.mxu0 0.0
    %1556 = vmatprep.subr.mxu0 0.0
    %1557 = vmatpush1.msra.mxu0 0.0
    %1558 = vmatprep.subr.mxu0 0.0
    %1559 = vmatpush1.msra.mxu0 0.0
    %1560 = vmatprep.subr.mxu0 0.0
    %1561 = vmatpush1.msra.mxu0 0.0
    %1562 = vmatprep.subr.mxu0 0.0
    %1563 = vmatpush1.msra.mxu0 0.0
    %1564 = vmatprep.subr.mxu0 0.0
    %1565 = vmatpush1.msra.mxu0 0.0
    %1566 = vmatprep.subr.mxu0 0.0
    %1567 = vmatpush1.msra.mxu0 0.0
    %1568 = vmatprep.subr.mxu0 0.0
    %1569 = vmatpush1.msra.mxu0 0.0
    %1570 = vmatprep.subr.mxu0 0.0
    %1571 = vmatpush1.msra.mxu0 0.0
    %1572 = vmatprep.subr.mxu0 0.0
    %1573 = vmatpush1.msra.mxu0 0.0
    %1574 = vmatprep.subr.mxu0 0.0
    %1575 = vmatpush1.msra.mxu0 0.0
    %1576 = vmatprep.subr.mxu0 0.0
    %1577 = vmatpush1.msra.mxu0 0.0
    %1578 = vmatprep.subr.mxu0 0.0
    %1579 = vmatpush1.msra.mxu0 0.0
    %1580 = vmatprep.subr.mxu0 0.0
    %1581 = vmatpush1.msra.mxu0 0.0
    %1582 = vmatprep.subr.mxu0 0.0
    %1583 = vmatpush1.msra.mxu0 0.0
    %1584 = vmatprep.subr.mxu0 0.0
    %1585 = vmatpush1.msra.mxu0 0.0
    %1586 = vmatprep.subr.mxu0 0.0
    %1587 = vmatpush1.msra.mxu0 0.0
    %1588 = vmatprep.subr.mxu0 0.0
    %1589 = vmatpush1.msra.mxu0 0.0
    %1590 = vmatprep.subr.mxu0 0.0
    %1591 = vmatpush1.msra.mxu0 0.0
    %1592 = vmatprep.subr.mxu0 0.0
    %1593 = vmatpush1.msra.mxu0 0.0
    %1594 = vmatprep.subr.mxu0 0.0
    %1595 = vmatpush1.msra.mxu0 0.0
    %1596 = vmatprep.subr.mxu0 0.0
    %1597 = vmatpush1.msra.mxu0 0.0
    %1598 = vmatprep.subr.mxu0 0.0
    %1599 = vmatpush1.msra.mxu0 0.0
    %1600 = vmatprep.subr.mxu0 0.0
    %1601 = vmatpush1.msra.mxu0 0.0
    %1602 = vmatprep.subr.mxu0 0.0
    %1603 = vmatpush1.msra.mxu0 0.0
    %1604 = vmatprep.mubr.f32.mxu0 0.0
    %1605 = vmatmul.mubr.f32.gmra.mrb[0].mxu0 %v1538
    %v1606 = vpop.f32.mrb[0].mxu0
    %v1607 = vadd.f32 0.0, %v1606
    %v1608 = vpop.f32.mrb[0].mxu0
    %1609 = vdwg.mxu0
    %1610 = vrot.lane.b32.xlu0 %v338, 96
    %v1611 = vpop.permute.xlu0 %1610
    %v1614 = vsel %vm339, %v1069, 0
    %1616 = vmatprep.subr.mxu0 0.0
    %1617 = vmatpush1.msra.mxu0 %v1611
    %1618 = vmatprep.subr.mxu0 0.0
    %1619 = vmatpush1.msra.mxu0 0.0
    %1620 = vmatprep.subr.mxu0 0.0
    %1621 = vmatpush1.msra.mxu0 0.0
    %1622 = vmatprep.subr.mxu0 0.0
    %1623 = vmatpush1.msra.mxu0 0.0
    %1624 = vmatprep.subr.mxu0 0.0
    %1625 = vmatpush1.msra.mxu0 0.0
    %1626 = vmatprep.subr.mxu0 0.0
    %1627 = vmatpush1.msra.mxu0 0.0
    %1628 = vmatprep.subr.mxu0 0.0
    %1629 = vmatpush1.msra.mxu0 0.0
    %1630 = vmatprep.subr.mxu0 0.0
    %1631 = vmatpush1.msra.mxu0 0.0
    %1632 = vmatprep.subr.mxu0 0.0
    %1633 = vmatpush1.msra.mxu0 0.0
    %1634 = vmatprep.subr.mxu0 0.0
    %1635 = vmatpush1.msra.mxu0 0.0
    %1636 = vmatprep.subr.mxu0 0.0
    %1637 = vmatpush1.msra.mxu0 0.0
    %1638 = vmatprep.subr.mxu0 0.0
    %1639 = vmatpush1.msra.mxu0 0.0
    %1640 = vmatprep.subr.mxu0 0.0
    %1641 = vmatpush1.msra.mxu0 0.0
    %1642 = vmatprep.subr.mxu0 0.0
    %1643 = vmatpush1.msra.mxu0 0.0
    %1644 = vmatprep.subr.mxu0 0.0
    %1645 = vmatpush1.msra.mxu0 0.0
    %1646 = vmatprep.subr.mxu0 0.0
    %1647 = vmatpush1.msra.mxu0 0.0
    %1648 = vmatprep.subr.mxu0 0.0
    %1649 = vmatpush1.msra.mxu0 0.0
    %1650 = vmatprep.subr.mxu0 0.0
    %1651 = vmatpush1.msra.mxu0 0.0
    %1652 = vmatprep.subr.mxu0 0.0
    %1653 = vmatpush1.msra.mxu0 0.0
    %1654 = vmatprep.subr.mxu0 0.0
    %1655 = vmatpush1.msra.mxu0 0.0
    %1656 = vmatprep.subr.mxu0 0.0
    %1657 = vmatpush1.msra.mxu0 0.0
    %1658 = vmatprep.subr.mxu0 0.0
    %1659 = vmatpush1.msra.mxu0 0.0
    %1660 = vmatprep.subr.mxu0 0.0
    %1661 = vmatpush1.msra.mxu0 0.0
    %1662 = vmatprep.subr.mxu0 0.0
    %1663 = vmatpush1.msra.mxu0 0.0
    %1664 = vmatprep.subr.mxu0 0.0
    %1665 = vmatpush1.msra.mxu0 0.0
    %1666 = vmatprep.subr.mxu0 0.0
    %1667 = vmatpush1.msra.mxu0 0.0
    %1668 = vmatprep.subr.mxu0 0.0
    %1669 = vmatpush1.msra.mxu0 0.0
    %1670 = vmatprep.subr.mxu0 0.0
    %1671 = vmatpush1.msra.mxu0 0.0
    %1672 = vmatprep.subr.mxu0 0.0
    %1673 = vmatpush1.msra.mxu0 0.0
    %1674 = vmatprep.subr.mxu0 0.0
    %1675 = vmatpush1.msra.mxu0 0.0
    %1676 = vmatprep.subr.mxu0 0.0
    %1677 = vmatpush1.msra.mxu0 0.0
    %1678 = vmatprep.subr.mxu0 0.0
    %1679 = vmatpush1.msra.mxu0 0.0
    %1680 = vmatprep.mubr.f32.mxu0 0.0
    %1681 = vmatmul.mubr.f32.gmra.mrb[0].mxu0 %v1614
    %v1682 = vpop.f32.mrb[0].mxu0
    %v1683 = vadd.f32 0.0, %v1682
    %v1684 = vpop.f32.mrb[0].mxu0
    %1685 = vdwg.mxu0
    %1688 = vrot.lane.b32.xlu0 %v1227, 8
    %v1689 = vpop.permute.xlu0 %1688
    %1690 = vrot.lane.b32.xlu0 %v1531, 8
    %v1691 = vpop.permute.xlu0 %1690
    %1696 = vrot.lane.b32.xlu0 %v1303, 16
    %v1697 = vpop.permute.xlu0 %1696
    %1698 = vrot.lane.b32.xlu0 %v1607, 16
    %v1699 = vpop.permute.xlu0 %1698
    %1704 = vrot.lane.b32.xlu0 %v1379, 24
    %v1705 = vpop.permute.xlu0 %1704
    %1706 = vrot.lane.b32.xlu0 %v1683, 24
    %v1707 = vpop.permute.xlu0 %1706
    %v1710 = vsel %vm339, %v1151, %v1689
    %v1711 = vsel %vm339, %v1455, %v1691
    %vm1712 = vcmask 130048
    %v1713 = vsel %vm1712, %v1710, %v1697
    %v1714 = vsel %vm1712, %v1711, %v1699
    %vm1715 = vcmask 195584
    %v1716 = vsel %vm1715, %v1713, %v1705
    %v1717 = vsel %vm1715, %v1714, %v1707
    %v1718 = vld [vmem:[#allocation10] sm:$0xff]
    %v1719 = vld [vmem:[#allocation10 + $0x8] sm:$0xff]
    %v1720 = vld [vmem:[#allocation10 + $0x10] sm:$0xff]
    %v1721 = vld [vmem:[#allocation10 + $0x18] sm:$0xff]
    %v1722 = vlaneseq
    %v1723 = vshrl.u32 %v1722, 7
    %v1724 = vsub.s32 3, %v1723
    %v1725 = vrot.slane %v105, %v1724
    %v1727 = vsel %vm114, %v1716, 0
    %v1730 = vsel %vm114, %v1717, 0
    %1732 = vmatprep.subr.mxu0 0.0
    %1733 = vmatpush1.msra.mxu0 %v1718
    %1734 = vmatprep.subr.mxu0 0.0
    %1735 = vmatpush1.msra.mxu0 %v1719
    %1736 = vmatprep.subr.mxu0 0.0
    %1737 = vmatpush1.msra.mxu0 %v1720
    %1738 = vmatprep.subr.mxu0 0.0
    %1739 = vmatpush1.msra.mxu0 %v1721
    %1740 = vmatprep.subr.mxu0 0.0
    %1741 = vmatpush1.msra.mxu0 0.0
    %1742 = vmatprep.subr.mxu0 0.0
    %1743 = vmatpush1.msra.mxu0 0.0
    %1744 = vmatprep.subr.mxu0 0.0
    %1745 = vmatpush1.msra.mxu0 0.0
    %1746 = vmatprep.subr.mxu0 0.0
    %1747 = vmatpush1.msra.mxu0 0.0
    %1748 = vmatprep.subr.mxu0 0.0
    %1749 = vmatpush1.msra.mxu0 0.0
    %1750 = vmatprep.subr.mxu0 0.0
    %1751 = vmatpush1.msra.mxu0 0.0
    %1752 = vmatprep.subr.mxu0 0.0
    %1753 = vmatpush1.msra.mxu0 0.0
    %1754 = vmatprep.subr.mxu0 0.0
    %1755 = vmatpush1.msra.mxu0 0.0
    %1756 = vmatprep.subr.mxu0 0.0
    %1757 = vmatpush1.msra.mxu0 0.0
    %1758 = vmatprep.subr.mxu0 0.0
    %1759 = vmatpush1.msra.mxu0 0.0
    %1760 = vmatprep.subr.mxu0 0.0
    %1761 = vmatpush1.msra.mxu0 0.0
    %1762 = vmatprep.subr.mxu0 0.0
    %1763 = vmatpush1.msra.mxu0 0.0
    %1764 = vmatprep.subr.mxu0 0.0
    %1765 = vmatpush1.msra.mxu0 0.0
    %1766 = vmatprep.subr.mxu0 0.0
    %1767 = vmatpush1.msra.mxu0 0.0
    %1768 = vmatprep.subr.mxu0 0.0
    %1769 = vmatpush1.msra.mxu0 0.0
    %1770 = vmatprep.subr.mxu0 0.0
    %1771 = vmatpush1.msra.mxu0 0.0
    %1772 = vmatprep.subr.mxu0 0.0
    %1773 = vmatpush1.msra.mxu0 0.0
    %1774 = vmatprep.subr.mxu0 0.0
    %1775 = vmatpush1.msra.mxu0 0.0
    %1776 = vmatprep.subr.mxu0 0.0
    %1777 = vmatpush1.msra.mxu0 0.0
    %1778 = vmatprep.subr.mxu0 0.0
    %1779 = vmatpush1.msra.mxu0 0.0
    %1780 = vmatprep.subr.mxu0 0.0
    %1781 = vmatpush1.msra.mxu0 0.0
    %1782 = vmatprep.subr.mxu0 0.0
    %1783 = vmatpush1.msra.mxu0 0.0
    %1784 = vmatprep.subr.mxu0 0.0
    %1785 = vmatpush1.msra.mxu0 0.0
    %1786 = vmatprep.subr.mxu0 0.0
    %1787 = vmatpush1.msra.mxu0 0.0
    %1788 = vmatprep.subr.mxu0 0.0
    %1789 = vmatpush1.msra.mxu0 0.0
    %1790 = vmatprep.subr.mxu0 0.0
    %1791 = vmatpush1.msra.mxu0 0.0
    %1792 = vmatprep.subr.mxu0 0.0
    %1793 = vmatpush1.msra.mxu0 0.0
    %1794 = vmatprep.subr.mxu0 0.0
    %1795 = vmatpush1.msra.mxu0 0.0
    %1796 = vmatprep.mubr.f32.mxu0 0.0
    %1797 = vmatmul.mubr.f32.gmra.mrb[0].mxu0 %v1727
    %v1798 = vpop.f32.mrb[0].mxu0
    %v1799 = vadd.f32 %v1725, %v1798
    %v1800 = vpop.f32.mrb[0].mxu0
    %1801 = vmatprep.mubr.f32.mxu0 0.0
    %1802 = vmatmul.mubr.f32.gmra.mrb[0].mxu0 %v1730
    %v1803 = vpop.f32.mrb[0].mxu0
    %v1804 = vadd.f32 %v1725, %v1803
    %v1805 = vpop.f32.mrb[0].mxu0
    %1806 = vdwg.mxu0
    %v1807 = vadd.f32 %v1799, %v101
    %v1808 = vadd.f32 %v1804, %v102
    %v1809 = vsel %vm114, %v1807, 0.0
    %1810 = vadd.xlane.f32.xlu0 %v1809
    %v1811 = vpop.xlane.xlu0 %1810
    %v1812 = vsel %vm114, %v1808, 0.0
    %1813 = vadd.xlane.f32.xlu0 %v1812
    %v1814 = vpop.xlane.xlu0 %1813
    %v1815 = vrcp.pop 32.0
    %v1816 = vmul.f32 %v1811, %v1815
    %v1817 = vmul.f32 %v1814, %v1815
    %v1818 = vsub.f32 %v1807, %v1816
    %v1819 = vsub.f32 %v1808, %v1817
    %v1820 = vmul.f32 %v1818, %v1818
    %v1821 = vmul.f32 %v1819, %v1819
    %v1822 = vsel %vm114, %v1820, 0.0
    %1823 = vadd.xlane.f32.xlu0 %v1822
    %v1824 = vpop.xlane.xlu0 %1823
    %v1825 = vsel %vm114, %v1821, 0.0
    %1826 = vadd.xlane.f32.xlu0 %v1825
    %v1827 = vpop.xlane.xlu0 %1826
    %v1828 = vmul.f32 %v1824, %v1815
    %v1829 = vmul.f32 %v1827, %v1815
    %v1830 = vadd.f32 %v1828, 1e-12
    %v1831 = vadd.f32 %v1829, 1e-12
    %v1832 = vrsqrt.pop %v1830
    %v1833 = vrsqrt.pop %v1831
    %v1834 = vmul.f32 %v1818, %v1832
    %v1835 = vmul.f32 %v1819, %v1833
    %v1836 = vlaneseq
    %v1837 = vshrl.u32 %v1836, 7
    %v1838 = vsub.s32 4, %v1837
    %v1839 = vrot.slane %v105, %v1838
    %v1840 = vmul.f32 %v1834, %v1839
    %v1841 = vmul.f32 %v1835, %v1839
    %v1842 = vlaneseq
    %v1843 = vshrl.u32 %v1842, 7
    %v1844 = vsub.s32 5, %v1843
    %v1845 = vrot.slane %v105, %v1844
    %v1846 = vadd.f32 %v1840, %v1845
    %v1847 = vadd.f32 %v1841, %v1845
    %v1848 = vmul.f32 %v1846, 0.5
    %v1849 = vmul.f32 %v1847, 0.5
    %v1850 = vmul.f32 %v1846, 0.70710677
    %v1851 = vmul.f32 %v1847, 0.70710677
    %v1852 = verf.f32.pop %v1850
    %v1853 = verf.f32.pop %v1851
    %v1854 = vadd.f32 %v1852, 1.0
    %v1855 = vadd.f32 %v1853, 1.0
    %v1856 = vmul.f32 %v1848, %v1854
    %v1857 = vmul.f32 %v1849, %v1855
    %v1858 = vmul.f32 %v1856, %v1055
    %v1859 = vmul.f32 %v1857, %v1060
    %1860 = vst.msk [vmem:[#allocation11] sm:$0xff] %vm114, %v1858
    %1861 = vst.msk [vmem:[#allocation11 + $0x8] sm:$0xff] %vm114, %v1859
    // Predicated region
    $region54: #{tpu_custom_call.1} parent=1 // pred_check
      _
    $region55: #{tpu_custom_call.1} parent=1 // pred_check_branch
      %1863 = sbr.rel (0) target = $region57
    $region56: #{tpu_custom_call.1} parent=1 // pred_region
      %s1865 = ssub.s32 256, 256
      %1866 = vsyncadd [#allocation4], %s1865
      %s1867 = sshll.u32 [#allocation11], 4
      %s1868 = int_to_ptr.vmem [resolvable:$true] %s1867
      %1873 = dma.vmem_to_hbm [thread:$0]  %s1868, 256, %s8, [#allocation4], 128, 128, 8
    $region57: #{tpu_custom_call.1} parent=1 // pred_fallthru
      _
    // Predicated region
    $region58: #{tpu_custom_call.1} parent=1 // pred_check
      _
    $region59: #{tpu_custom_call.1} parent=1 // pred_check_branch
      %1875 = sbr.rel (0) target = $region61
    $region60: #{tpu_custom_call.1} parent=1 // pred_region
      %s1877 = ssub.s32 1024, 1024
      %1878 = vsyncadd [#allocation13], %s1877
      %s1879 = sshll.u32 [#allocation12], 4
      %s1880 = int_to_ptr.vmem [resolvable:$true] %s1879
      %1885 = dma.vmem_to_hbm [thread:$0]  %s1880, 1024, %s9, [#allocation13], 128, 128, 8
    $region61: #{tpu_custom_call.1} parent=1 // pred_fallthru
      _
    // Predicated region
    $region62: #{tpu_custom_call.1} parent=1 // pred_check
      _
    $region63: #{tpu_custom_call.1} parent=1 // pred_check_branch
      %1887 = sbr.rel (0) target = $region65
    $region64: #{tpu_custom_call.1} parent=1 // pred_region
      %1888 = dma.done [#allocation4], 256
    $region65: #{tpu_custom_call.1} parent=1 // pred_fallthru
      _
    // Predicated region
    $region66: #{tpu_custom_call.1} parent=1 // pred_check
      _
    $region67: #{tpu_custom_call.1} parent=1 // pred_check_branch
      %1890 = sbr.rel (0) target = $region69
    $region68: #{tpu_custom_call.1} parent=1 // pred_region
      %1891 = dma.done [#allocation13], 1024
    $region69: #{tpu_custom_call.1} parent=1 // pred_fallthru
      _
    %1892 = vsyncpa [#allocation3], 1
    %1893 = vsyncpa [#allocation6], 1
    %1894 = vsyncpa [#allocation9], 1
    %1895 = vsyncpa [#allocation4], 1
    %1896 = vsyncpa [#allocation13], 1

</llo_original>
